<compile_context>
chip_gen: v6e
topology: v6e:2x2x1
jax: 0.10.0
libtpu: 0.0.40
codegen_flags: <defaults>
</compile_context>

<pallas_src>
import functools
import math

import jax
import jax.numpy as jnp
from jax import lax
from jax.experimental import pallas as pl
from jax.experimental.pallas import tpu as pltpu


def _round_up(x, m):
    return -(-x // m) * m


def fnn_kernel(tok_ref, w1_ref, b1_ref, w2_ref, b2_ref, out_ref, *, tanh_dtype):
    """One batch tile of the FNN forward pass.

    tok_ref : (TB, S)     int32  token ids for this batch tile
    w1_ref  : (S*T, Hp)   bf16   embedding-folded hidden weights (VMEM-resident)
    b1_ref  : (1, Hp)     f32
    w2_ref  : (Hp, T)     bf16   decoder weights (pre-transposed, H padded)
    b2_ref  : (1, T)      f32
    out_ref : (TB, T)            log-softmax output
    """
    tb, seq_len = tok_ref.shape
    n_token = w2_ref.shape[1]

    tok = tok_ref[...]                                             # (TB, S) int32
    vocab_iota = lax.broadcasted_iota(jnp.int32, (tb, n_token), 1)

    # Embedding gather + hidden Linear fused into ONE deep MXU matmul:
    #   flat @ W1^T == concat_s(one_hot_s) @ concat_s(table @ W1_s)
    # Each one-hot piece is a lane-aligned (TB, 128) block, so the concat is a
    # pure lane append (no relayout) and the contraction depth is K = S*T
    # instead of 2*S tiny matmuls (including K=16 contractions).
    pieces = [
        (tok[:, s:s + 1] == vocab_iota).astype(w1_ref.dtype)       # (TB, T) bf16
        for s in range(seq_len)
    ]
    one_hot = jnp.concatenate(pieces, axis=1)                      # (TB, S*T) bf16
    acc = jnp.dot(one_hot, w1_ref[...],
                  preferred_element_type=jnp.float32)              # (TB, Hp) f32

    # tanh on the EUP. tanh_dtype=bf16 halves EUP pushes on v6e/v7x; the f32
    # default is v5e-safe and bit-matches the references in the wrapper.
    h = jnp.tanh((acc + b1_ref[...]).astype(tanh_dtype))

    logits = jnp.dot(h.astype(w2_ref.dtype), w2_ref[...],
                     preferred_element_type=jnp.float32) + b2_ref[...]  # (TB, T)

    # Numerically stable log-softmax over the vocab dim (dim=1 in PyTorch).
    # Assumes the whole vocab sits in one lane-dense block (T multiple of 128);
    # for large vocabularies, tile T on an "arbitrary" grid axis with an online
    # running-max / sum-exp reduction instead.
    m = jnp.max(logits, axis=-1, keepdims=True)
    shifted = logits - m
    lse = jnp.log(jnp.sum(jnp.exp(shifted), axis=-1, keepdims=True))
    # NOTE: this (TB, T) store dominates per-step HBM traffic (64 KB vs 4 KB of
    # tokens at these shapes); pass out_dtype=bf16 to halve the writeback.
    out_ref[...] = (shifted - lse).astype(out_ref.dtype)


def prepare_params(emb_table, w1, b1, w2, b2):
    """Fold the embedding table into W1 and pad the hidden dim to 128 lanes.

    Returns:
      w1_fold (S, T, Hp) bf16  with w1_fold[s] = table @ W1_s (folded in f32)
      b1      (1, Hp)    f32
      w2      (Hp, T)    bf16  (nn.Linear weight transposed, H padded)
      b2      (1, T)     f32
    Padding is exact: padded pre-activations are 0, tanh(0)=0, and the padded
    W2 rows are zero.
    """
    n_token, n_emb = emb_table.shape
    n_hidden, fan_in = w1.shape
    seq_len = fan_in // n_emb
    hp = _round_up(max(n_hidden, 1), 128)

    w1_seh = w1.T.reshape(seq_len, n_emb, n_hidden).astype(jnp.float32)
    w1_fold = jnp.einsum("te,seh->sth", emb_table.astype(jnp.float32), w1_seh)
    w1_fold_p = (jnp.zeros((seq_len, n_token, hp), jnp.float32)
                 .at[:, :, :n_hidden].set(w1_fold).astype(jnp.bfloat16))
    b1_p = jnp.zeros((1, hp), jnp.float32).at[0, :n_hidden].set(b1)
    w2_p = (jnp.zeros((hp, n_token), jnp.float32)
            .at[:n_hidden, :].set(w2.T.astype(jnp.float32)).astype(jnp.bfloat16))
    b2_p = b2.reshape(1, n_token).astype(jnp.float32)
    return w1_fold_p, b1_p, w2_p, b2_p


def fnn_forward(tokens, emb_table, w1, b1, w2, b2, *,
                batch_tile=None, tanh_dtype=jnp.float32, out_dtype=jnp.float32):
    """FNNModel.forward. tokens (B, S) int32 -> (B, n_token) log-probs.

    Weights use the PyTorch nn.Linear layout:
      w1 (n_hidden, n_emb*seq_len), b1 (n_hidden,)
      w2 (n_token, n_hidden),       b2 (n_token,)
    Token ids must lie in [0, n_token); out-of-range ids produce a zero
    embedding row here (torch.nn.Embedding would raise).
    """
    B, S = tokens.shape
    n_token, _ = emb_table.shape

    w1_fold_p, b1_p, w2_p, b2_p = prepare_params(emb_table, w1, b1, w2, b2)
    seq_len, _, hp = w1_fold_p.shape
    w1_flat = w1_fold_p.reshape(seq_len * n_token, hp)          # (S*T, Hp) bf16

    # Grid sizing: two "parallel" steps keep both TensorCores busy on v7x and
    # cost only ~0.35us of extra step overhead on single-TC v5e/v6e.
    if batch_tile is None:
        batch_tile = min(1024, max(16, _round_up(pl.cdiv(B, 2), 16)))
    tb = max(16, min(_round_up(batch_tile, 16), _round_up(B, 16)))
    num_blocks = pl.cdiv(B, tb)
    b_pad = num_blocks * tb
    tokens_p = tokens if b_pad == B else jnp.pad(tokens, ((0, b_pad - B), (0, 0)))

    out_bytes = jnp.dtype(out_dtype).itemsize
    flops = 2 * b_pad * hp * (seq_len * n_token + n_token)
    transcendentals = b_pad * (hp + n_token)                    # tanh + exp
    bytes_accessed = (tokens_p.size * 4 + w1_flat.size * 2 + b1_p.size * 4
                      + w2_p.size * 2 + b2_p.size * 4 + b_pad * n_token * out_bytes)

    kernel = functools.partial(fnn_kernel, tanh_dtype=tanh_dtype)

    out = pl.pallas_call(
        kernel,
        out_shape=jax.ShapeDtypeStruct((b_pad, n_token), out_dtype),
        grid=(num_blocks,),
        in_specs=[
            pl.BlockSpec((tb, S), lambda i: (i, 0)),                  # tokens (batch-tiled)
            # Constant-index (VMEM-resident) operands. Single-buffering them
            # (pipeline_mode=pl.Buffered(1)) would halve their VMEM footprint;
            # skipped here since total residency is < 1 MiB at these shapes.
            pl.BlockSpec((seq_len * n_token, hp), lambda i: (0, 0)),  # folded W1
            pl.BlockSpec((1, hp), lambda i: (0, 0)),                  # b1
            pl.BlockSpec((hp, n_token), lambda i: (0, 0)),            # W2
            pl.BlockSpec((1, n_token), lambda i: (0, 0)),             # b2
        ],
        out_specs=pl.BlockSpec((tb, n_token), lambda i: (i, 0)),
        compiler_params=pltpu.CompilerParams(
            dimension_semantics=("parallel",)),
        cost_estimate=pl.CostEstimate(
            flops=flops, transcendentals=transcendentals,
            bytes_accessed=bytes_accessed),
    )(tokens_p, w1_flat, b1_p, w2_p, b2_p)

    return out[:B]


def reference_forward_f32(tokens, emb_table, w1, b1, w2, b2):
    """Pure-f32 reference (matches the PyTorch module's math)."""
    B = tokens.shape[0]
    emb_flat = jnp.take(emb_table, tokens, axis=0).reshape(B, -1)
    h = jnp.tanh(emb_flat @ w1.T + b1)
    logits = h @ w2.T + b2
    return jax.nn.log_softmax(logits, axis=1)


def reference_forward_matched(tokens, emb_table, w1, b1, w2, b2):
    """Same math as the kernel: folded bf16 weights, f32 accumulation, f32 tanh."""
    B, S = tokens.shape
    w1_fold_p, b1_p, w2_p, b2_p = prepare_params(emb_table, w1, b1, w2, b2)
    acc = jnp.zeros((B, w1_fold_p.shape[2]), jnp.float32)
    for s in range(S):
        acc = acc + w1_fold_p[s].astype(jnp.float32)[tokens[:, s]]
    h = jnp.tanh(acc + b1_p)
    logits = jnp.dot(h.astype(jnp.bfloat16), w2_p,
                     preferred_element_type=jnp.float32) + b2_p
    return jax.nn.log_softmax(logits, axis=1)


if __name__ == "__main__":
    # Shapes consistent with FNNModel(n_token, n_emb, n_hidden, seq_len).
    n_token, n_emb, n_hidden, seq_len = 128, 16, 32, 8
    batch = 256   # default tiling -> TB=128, grid=(2,): both TCs busy on v7x

    key = jax.random.PRNGKey(0)
    k_tok, k_emb, k_w1, k_b1, k_w2, k_b2 = jax.random.split(key, 6)

    emb_table = jax.random.normal(k_emb, (n_token, n_emb), jnp.float32)
    fan1 = n_emb * seq_len
    bound1 = 1.0 / math.sqrt(fan1)
    w1 = jax.random.uniform(k_w1, (n_hidden, fan1), jnp.float32, -bound1, bound1)
    b1 = jax.random.uniform(k_b1, (n_hidden,), jnp.float32, -bound1, bound1)
    bound2 = 1.0 / math.sqrt(n_hidden)
    w2 = jax.random.uniform(k_w2, (n_token, n_hidden), jnp.float32, -bound2, bound2)
    b2 = jax.random.uniform(k_b2, (n_token,), jnp.float32, -bound2, bound2)

    tokens = jax.random.randint(k_tok, (batch, seq_len), 0, n_token, jnp.int32)

    out = fnn_forward(tokens, emb_table, w1, b1, w2, b2)
    out = jax.block_until_ready(out)

    ref_match = reference_forward_matched(tokens, emb_table, w1, b1, w2, b2)
    ref_f32 = reference_forward_f32(tokens, emb_table, w1, b1, w2, b2)

    assert out.shape == (batch, n_token)
    assert jnp.allclose(out, ref_match, atol=5e-3, rtol=5e-3), \
        "mismatch vs folded-bf16 matched reference"
    assert jnp.allclose(out, ref_f32, atol=3e-2, rtol=3e-2), \
        "mismatch vs f32 reference"
    assert jnp.allclose(jnp.exp(out).sum(axis=1), 1.0, atol=1e-3), \
        "log-softmax rows do not normalize"

    print("KERNEL_OK")
</pallas_src>

<mosaic_0001>
module attributes {stable_mosaic.version = 11 : i64} {
  func.func @fnn_kernel(%arg0: i32, %arg1: memref<128x8xi32, #tpu.memory_space<vmem>>, %arg2: memref<1024x128xbf16, #tpu.memory_space<vmem>>, %arg3: memref<1x128xf32, #tpu.memory_space<vmem>>, %arg4: memref<128x128xbf16, #tpu.memory_space<vmem>>, %arg5: memref<1x128xf32, #tpu.memory_space<vmem>>, %arg6: memref<128x128xf32, #tpu.memory_space<vmem>>) attributes {dimension_semantics = [#tpu.dimension_semantics<parallel>], iteration_bounds = array<i64: 2>, scalar_prefetch = 0 : i64, scratch_operands = 0 : i64, tpu.core_type = #tpu.core_type<tc>, window_params = [{transform_indices = @transform_0, window_bounds = array<i64: 128, 8>}, {pipeline_mode = #tpu.pipeline_mode<synchronous>, transform_indices = @transform_1, window_bounds = array<i64: 1024, 128>}, {pipeline_mode = #tpu.pipeline_mode<synchronous>, transform_indices = @transform_2, window_bounds = array<i64: 1, 128>}, {pipeline_mode = #tpu.pipeline_mode<synchronous>, transform_indices = @transform_3, window_bounds = array<i64: 128, 128>}, {pipeline_mode = #tpu.pipeline_mode<synchronous>, transform_indices = @transform_4, window_bounds = array<i64: 1, 128>}, {transform_indices = @transform_5, window_bounds = array<i64: 128, 128>}]} {
    %c0 = arith.constant 0 : index
    %c0_0 = arith.constant 0 : index
    %0 = vector.load %arg1[%c0, %c0_0] : memref<128x8xi32, #tpu.memory_space<vmem>>, vector<128x8xi32>
    %1 = tpu.iota {dimensions = array<i32: 1>} : vector<128x128xi32>
    %2 = vector.extract_strided_slice %0 {offsets = [0, 0], sizes = [128, 1], strides = [1, 1]} : vector<128x8xi32> to vector<128x1xi32>
    %3 = vector.broadcast %2 : vector<128x1xi32> to vector<128x128xi32>
    %4 = arith.cmpi eq, %3, %1 : vector<128x128xi32>
    %5 = arith.extui %4 : vector<128x128xi1> to vector<128x128xi32>
    %6 = arith.sitofp %5 : vector<128x128xi32> to vector<128x128xf32>
    %7 = arith.truncf %6 : vector<128x128xf32> to vector<128x128xbf16>
    %8 = vector.extract_strided_slice %0 {offsets = [0, 1], sizes = [128, 1], strides = [1, 1]} : vector<128x8xi32> to vector<128x1xi32>
    %9 = vector.broadcast %8 : vector<128x1xi32> to vector<128x128xi32>
    %10 = arith.cmpi eq, %9, %1 : vector<128x128xi32>
    %11 = arith.extui %10 : vector<128x128xi1> to vector<128x128xi32>
    %12 = arith.sitofp %11 : vector<128x128xi32> to vector<128x128xf32>
    %13 = arith.truncf %12 : vector<128x128xf32> to vector<128x128xbf16>
    %14 = vector.extract_strided_slice %0 {offsets = [0, 2], sizes = [128, 1], strides = [1, 1]} : vector<128x8xi32> to vector<128x1xi32>
    %15 = vector.broadcast %14 : vector<128x1xi32> to vector<128x128xi32>
    %16 = arith.cmpi eq, %15, %1 : vector<128x128xi32>
    %17 = arith.extui %16 : vector<128x128xi1> to vector<128x128xi32>
    %18 = arith.sitofp %17 : vector<128x128xi32> to vector<128x128xf32>
    %19 = arith.truncf %18 : vector<128x128xf32> to vector<128x128xbf16>
    %20 = vector.extract_strided_slice %0 {offsets = [0, 3], sizes = [128, 1], strides = [1, 1]} : vector<128x8xi32> to vector<128x1xi32>
    %21 = vector.broadcast %20 : vector<128x1xi32> to vector<128x128xi32>
    %22 = arith.cmpi eq, %21, %1 : vector<128x128xi32>
    %23 = arith.extui %22 : vector<128x128xi1> to vector<128x128xi32>
    %24 = arith.sitofp %23 : vector<128x128xi32> to vector<128x128xf32>
    %25 = arith.truncf %24 : vector<128x128xf32> to vector<128x128xbf16>
    %26 = vector.extract_strided_slice %0 {offsets = [0, 4], sizes = [128, 1], strides = [1, 1]} : vector<128x8xi32> to vector<128x1xi32>
    %27 = vector.broadcast %26 : vector<128x1xi32> to vector<128x128xi32>
    %28 = arith.cmpi eq, %27, %1 : vector<128x128xi32>
    %29 = arith.extui %28 : vector<128x128xi1> to vector<128x128xi32>
    %30 = arith.sitofp %29 : vector<128x128xi32> to vector<128x128xf32>
    %31 = arith.truncf %30 : vector<128x128xf32> to vector<128x128xbf16>
    %32 = vector.extract_strided_slice %0 {offsets = [0, 5], sizes = [128, 1], strides = [1, 1]} : vector<128x8xi32> to vector<128x1xi32>
    %33 = vector.broadcast %32 : vector<128x1xi32> to vector<128x128xi32>
    %34 = arith.cmpi eq, %33, %1 : vector<128x128xi32>
    %35 = arith.extui %34 : vector<128x128xi1> to vector<128x128xi32>
    %36 = arith.sitofp %35 : vector<128x128xi32> to vector<128x128xf32>
    %37 = arith.truncf %36 : vector<128x128xf32> to vector<128x128xbf16>
    %38 = vector.extract_strided_slice %0 {offsets = [0, 6], sizes = [128, 1], strides = [1, 1]} : vector<128x8xi32> to vector<128x1xi32>
    %39 = vector.broadcast %38 : vector<128x1xi32> to vector<128x128xi32>
    %40 = arith.cmpi eq, %39, %1 : vector<128x128xi32>
    %41 = arith.extui %40 : vector<128x128xi1> to vector<128x128xi32>
    %42 = arith.sitofp %41 : vector<128x128xi32> to vector<128x128xf32>
    %43 = arith.truncf %42 : vector<128x128xf32> to vector<128x128xbf16>
    %44 = vector.extract_strided_slice %0 {offsets = [0, 7], sizes = [128, 1], strides = [1, 1]} : vector<128x8xi32> to vector<128x1xi32>
    %45 = vector.broadcast %44 : vector<128x1xi32> to vector<128x128xi32>
    %46 = arith.cmpi eq, %45, %1 : vector<128x128xi32>
    %47 = arith.extui %46 : vector<128x128xi1> to vector<128x128xi32>
    %48 = arith.sitofp %47 : vector<128x128xi32> to vector<128x128xf32>
    %49 = arith.truncf %48 : vector<128x128xf32> to vector<128x128xbf16>
    %50 = tpu.concatenate %7, %13, %19, %25, %31, %37, %43, %49 in 1 : vector<128x128xbf16>, vector<128x128xbf16>, vector<128x128xbf16>, vector<128x128xbf16>, vector<128x128xbf16>, vector<128x128xbf16>, vector<128x128xbf16>, vector<128x128xbf16> -> vector<128x1024xbf16>
    %c0_1 = arith.constant 0 : index
    %c0_2 = arith.constant 0 : index
    %51 = vector.load %arg2[%c0_1, %c0_2] : memref<1024x128xbf16, #tpu.memory_space<vmem>>, vector<1024x128xbf16>
    %cst = arith.constant dense<0.000000e+00> : vector<128x128xf32>
    %52 = tpu.matmul %50, %51, %cst {dimension_numbers = #tpu.dot_dimension_numbers<[1], [0], [0], [1], [0, 0, 1, 1], [], []>} : vector<128x1024xbf16>, vector<1024x128xbf16>, vector<128x128xf32> -> vector<128x128xf32>
    %c0_3 = arith.constant 0 : index
    %c0_4 = arith.constant 0 : index
    %53 = vector.load %arg3[%c0_3, %c0_4] : memref<1x128xf32, #tpu.memory_space<vmem>>, vector<1x128xf32>
    %54 = vector.broadcast %53 : vector<1x128xf32> to vector<128x128xf32>
    %55 = arith.addf %52, %54 : vector<128x128xf32>
    %56 = math.tanh %55 : vector<128x128xf32>
    %57 = arith.truncf %56 : vector<128x128xf32> to vector<128x128xbf16>
    %c0_5 = arith.constant 0 : index
    %c0_6 = arith.constant 0 : index
    %58 = vector.load %arg4[%c0_5, %c0_6] : memref<128x128xbf16, #tpu.memory_space<vmem>>, vector<128x128xbf16>
    %cst_7 = arith.constant dense<0.000000e+00> : vector<128x128xf32>
    %59 = tpu.matmul %57, %58, %cst_7 {dimension_numbers = #tpu.dot_dimension_numbers<[1], [0], [0], [1], [0, 0, 1, 1], [], []>} : vector<128x128xbf16>, vector<128x128xbf16>, vector<128x128xf32> -> vector<128x128xf32>
    %c0_8 = arith.constant 0 : index
    %c0_9 = arith.constant 0 : index
    %60 = vector.load %arg5[%c0_8, %c0_9] : memref<1x128xf32, #tpu.memory_space<vmem>>, vector<1x128xf32>
    %61 = vector.broadcast %60 : vector<1x128xf32> to vector<128x128xf32>
    %62 = arith.addf %59, %61 : vector<128x128xf32>
    %cst_10 = arith.constant dense<0xFF800000> : vector<128xf32>
    %63 = vector.multi_reduction <maximumf>, %62, %cst_10 [1] : vector<128x128xf32> to vector<128xf32>
    %64 = vector.shape_cast %63 : vector<128xf32> to vector<128x1xf32>
    %65 = vector.broadcast %64 : vector<128x1xf32> to vector<128x128xf32>
    %66 = arith.subf %62, %65 : vector<128x128xf32>
    %67 = math.exp %66 : vector<128x128xf32>
    %cst_11 = arith.constant dense<0.000000e+00> : vector<128xf32>
    %68 = vector.multi_reduction <add>, %67, %cst_11 [1] : vector<128x128xf32> to vector<128xf32>
    %69 = vector.shape_cast %68 : vector<128xf32> to vector<128x1xf32>
    %70 = math.log %69 : vector<128x1xf32>
    %71 = vector.broadcast %70 : vector<128x1xf32> to vector<128x128xf32>
    %72 = arith.subf %66, %71 : vector<128x128xf32>
    %c0_12 = arith.constant 0 : index
    %c0_13 = arith.constant 0 : index
    %73 = vector.load %arg6[%c0_12, %c0_13] : memref<128x128xf32, #tpu.memory_space<vmem>>, vector<128x128xf32>
    tpu.vector_store %arg6[%c0_12, %c0_13], %72 {strides = array<i32>} : memref<128x128xf32, #tpu.memory_space<vmem>>, vector<128x128xf32>,
    return
  }
  func.func @transform_0(%arg0: i32) -> (i32, i32) {
    %c0_i32 = arith.constant 0 : i32
    %c0_i32_0 = arith.constant 0 : i32
    return %arg0, %c0_i32 : i32, i32
  }
  func.func @transform_1(%arg0: i32) -> (i32, i32) {
    %c0_i32 = arith.constant 0 : i32
    %c0_i32_0 = arith.constant 0 : i32
    %c0_i32_1 = arith.constant 0 : i32
    return %c0_i32, %c0_i32_0 : i32, i32
  }
  func.func @transform_2(%arg0: i32) -> (i32, i32) {
    %c0_i32 = arith.constant 0 : i32
    %c0_i32_0 = arith.constant 0 : i32
    %c0_i32_1 = arith.constant 0 : i32
    return %c0_i32, %c0_i32_0 : i32, i32
  }
  func.func @transform_3(%arg0: i32) -> (i32, i32) {
    %c0_i32 = arith.constant 0 : i32
    %c0_i32_0 = arith.constant 0 : i32
    %c0_i32_1 = arith.constant 0 : i32
    return %c0_i32, %c0_i32_0 : i32, i32
  }
  func.func @transform_4(%arg0: i32) -> (i32, i32) {
    %c0_i32 = arith.constant 0 : i32
    %c0_i32_0 = arith.constant 0 : i32
    %c0_i32_1 = arith.constant 0 : i32
    return %c0_i32, %c0_i32_0 : i32, i32
  }
  func.func @transform_5(%arg0: i32) -> (i32, i32) {
    %c0_i32 = arith.constant 0 : i32
    %c0_i32_0 = arith.constant 0 : i32
    return %arg0, %c0_i32 : i32, i32
  }
}

</mosaic_0001>

<llo_original>
// kernel: tpu_custom_call.1
$region0: #{tpu_custom_call.1}
  #allocation0 [shape = 'u32[]', space=smem, size = 0x4, offset = 0x4, fixed_abs, tag = 'smem constant byte address 0x4 - core index']
  #allocation1 [shape = 'u32[144,128]{1,0:T(1,128)}', space=vmem, size = 0x12000, scoped, tag = 'internal scratch']
  %s0 = inlined_call_operand.vmem [shape: s32[256,8], index: 0, kind: input, shape index: {}]
  %s1 = inlined_call_operand.hbm [shape: bf16[1024,128], index: 1, kind: input, shape index: {}]
  %s2 = inlined_call_operand.vmem [shape: f32[1,128], index: 2, kind: input, shape index: {}]
  %s3 = inlined_call_operand.vmem [shape: bf16[128,128], index: 3, kind: input, shape index: {}]
  %s4 = inlined_call_operand.vmem [shape: f32[1,128], index: 4, kind: input, shape index: {}]
  %s5 = inlined_call_operand.hbm [shape: f32[256,128], index: 5, kind: output, shape index: {}]
  %s6 = sld [smem:[#allocation0]]
  $region57: #{tpu_custom_call.1} parent=0
    _
  %s8 = ssub.s32 1, %s6
  %s9 = scalar_select 0, %s8, %s6
  $region1: #{tpu_custom_call.1} parent=0
    #allocation2 [shape = 'u8[262144]{0}', space=vmem, size = 0x40000, scoped, tag = 'input window, operand 1, single buffered']
    #allocation3 [shape = 's32[2]{0}', space=sflag, size = 0x8, scoped, tag = 'scoped memory for tpu_custom_call.1']
    #allocation4 [shape = 's32[2]{0}', space=sflag, size = 0x8, scoped, tag = 'scoped memory for tpu_custom_call.1']
    #allocation5 [shape = 'u8[131072]{0}', space=vmem, size = 0x20000, scoped, tag = 'output window, operand 0']
    %10 = vsyncpa [#allocation3], 0
    %11 = vsyncpa [#allocation4], 0
    %s12 = scalar_lea.sflag [#allocation4], 1
    %13 = vsyncpa %s12, 0
    loop: start=0, step=1, limit=4
    $region2: #{tpu_custom_call.1} parent=1 // loop_pre_header
      _
    $region3: #{tpu_custom_call.1} parent=1 // loop_header
      %s15 = sphi 0, %s19
      %p16 = scmp.ge.s32.totalorder %s15, 4
      %s25 = sphi 0, %s27
      %s28 = sphi 0, %s25
      %s29 = sphi 0, %s28
      %s45 = sphi 0, %s29
      %s49 = sphi 0, %s49
      %s51 = sphi 0, %s49
      %s52 = sphi 0, %s51
      %s66 = sphi 0, %s52
      %s70 = sphi 0, %s70
      %s72 = sphi 0, %s70
      %s73 = sphi 0, %s72
      %s87 = sphi 0, %s73
      %s91 = sphi 0, %s91
      %s93 = sphi 0, %s91
      %s94 = sphi 0, %s93
      %s108 = sphi 0, %s94
      %s112 = sphi 0, %s112
      %s114 = sphi 0, %s112
      %s115 = sphi 0, %s114
      %s129 = sphi 0, %s115
      %s135 = sphi 0, %s137
      %s138 = sphi 0, %s135
      %s139 = sphi 0, %s138
      %s155 = sphi 0, %s139
    $region4: #{tpu_custom_call.1} parent=1 // loop_header_branch
      %18 = sbr.rel (%p16) target = $region8
    $region5: #{tpu_custom_call.1} parent=1 // loop_body
      %s20 = ssub.s32 %s15, 1
      %s21 = ssub.s32 %s15, 2
      %s22 = sadd.s32 %s15, 1
      %s23 = ssub.s32 %s15, %s22
      %p24 = scmp.eq.s32.totalorder %s23, 0
      %s26 = sadd.s32 %s25, 1
      %s27 = scalar_select %p24, %s25, %s26
      %p30 = pneg %p24
      %p31 = scmp.eq.s32.totalorder %s15, 1
      %p32 = por %p30, %p31
      %p33 = scmp.ne.s32.totalorder %s25, %s28
      %p34 = scmp.eq.s32.totalorder %s15, 0
      %p35 = por %p33, %p34
      %p36 = scmp.ne.s32.totalorder %s25, %s28
      %p37 = scmp.eq.s32.totalorder %s20, 1
      %p38 = por %p36, %p37
      %p39 = scmp.ne.s32.totalorder %s28, %s29
      %p40 = scmp.eq.s32.totalorder %s20, 0
      %p41 = por %p39, %p40
      %p42 = scmp.ne.s32.totalorder %s28, %s29
      %p43 = scmp.eq.s32.totalorder %s21, 1
      %p44 = por %p42, %p43
      %p46 = scmp.ne.s32.totalorder %s29, %s45
      %p47 = scmp.eq.s32.totalorder %s21, 0
      %p48 = por %p46, %p47
      %s50 = sadd.s32 %s49, 1
      %p53 = scmp.eq.s32.totalorder %s15, 1
      %p54 = scmp.ne.s32.totalorder %s49, %s51
      %p55 = scmp.eq.s32.totalorder %s15, 0
      %p56 = por %p54, %p55
      %p57 = scmp.ne.s32.totalorder %s49, %s51
      %p58 = scmp.eq.s32.totalorder %s20, 1
      %p59 = por %p57, %p58
      %p60 = scmp.ne.s32.totalorder %s51, %s52
      %p61 = scmp.eq.s32.totalorder %s20, 0
      %p62 = por %p60, %p61
      %p63 = scmp.ne.s32.totalorder %s51, %s52
      %p64 = scmp.eq.s32.totalorder %s21, 1
      %p65 = por %p63, %p64
      %p67 = scmp.ne.s32.totalorder %s52, %s66
      %p68 = scmp.eq.s32.totalorder %s21, 0
      %p69 = por %p67, %p68
      %s71 = sadd.s32 %s70, 1
      %p74 = scmp.eq.s32.totalorder %s15, 1
      %p75 = scmp.ne.s32.totalorder %s70, %s72
      %p76 = scmp.eq.s32.totalorder %s15, 0
      %p77 = por %p75, %p76
      %p78 = scmp.ne.s32.totalorder %s70, %s72
      %p79 = scmp.eq.s32.totalorder %s20, 1
      %p80 = por %p78, %p79
      %p81 = scmp.ne.s32.totalorder %s72, %s73
      %p82 = scmp.eq.s32.totalorder %s20, 0
      %p83 = por %p81, %p82
      %p84 = scmp.ne.s32.totalorder %s72, %s73
      %p85 = scmp.eq.s32.totalorder %s21, 1
      %p86 = por %p84, %p85
      %p88 = scmp.ne.s32.totalorder %s73, %s87
      %p89 = scmp.eq.s32.totalorder %s21, 0
      %p90 = por %p88, %p89
      %s92 = sadd.s32 %s91, 1
      %p95 = scmp.eq.s32.totalorder %s15, 1
      %p96 = scmp.ne.s32.totalorder %s91, %s93
      %p97 = scmp.eq.s32.totalorder %s15, 0
      %p98 = por %p96, %p97
      %p99 = scmp.ne.s32.totalorder %s91, %s93
      %p100 = scmp.eq.s32.totalorder %s20, 1
      %p101 = por %p99, %p100
      %p102 = scmp.ne.s32.totalorder %s93, %s94
      %p103 = scmp.eq.s32.totalorder %s20, 0
      %p104 = por %p102, %p103
      %p105 = scmp.ne.s32.totalorder %s93, %s94
      %p106 = scmp.eq.s32.totalorder %s21, 1
      %p107 = por %p105, %p106
      %p109 = scmp.ne.s32.totalorder %s94, %s108
      %p110 = scmp.eq.s32.totalorder %s21, 0
      %p111 = por %p109, %p110
      %s113 = sadd.s32 %s112, 1
      %p116 = scmp.eq.s32.totalorder %s15, 1
      %p117 = scmp.ne.s32.totalorder %s112, %s114
      %p118 = scmp.eq.s32.totalorder %s15, 0
      %p119 = por %p117, %p118
      %p120 = scmp.ne.s32.totalorder %s112, %s114
      %p121 = scmp.eq.s32.totalorder %s20, 1
      %p122 = por %p120, %p121
      %p123 = scmp.ne.s32.totalorder %s114, %s115
      %p124 = scmp.eq.s32.totalorder %s20, 0
      %p125 = por %p123, %p124
      %p126 = scmp.ne.s32.totalorder %s114, %s115
      %p127 = scmp.eq.s32.totalorder %s21, 1
      %p128 = por %p126, %p127
      %p130 = scmp.ne.s32.totalorder %s115, %s129
      %p131 = scmp.eq.s32.totalorder %s21, 0
      %p132 = por %p130, %p131
      %s133 = ssub.s32 %s15, %s22
      %p134 = scmp.eq.s32.totalorder %s133, 0
      %s136 = sadd.s32 %s135, 1
      %s137 = scalar_select %p134, %s135, %s136
      %p140 = pneg %p134
      %p141 = scmp.eq.s32.totalorder %s15, 1
      %p142 = por %p140, %p141
      %p143 = scmp.ne.s32.totalorder %s135, %s138
      %p144 = scmp.eq.s32.totalorder %s15, 0
      %p145 = por %p143, %p144
      %p146 = scmp.ne.s32.totalorder %s135, %s138
      %p147 = scmp.eq.s32.totalorder %s20, 1
      %p148 = por %p146, %p147
      %p149 = scmp.ne.s32.totalorder %s138, %s139
      %p150 = scmp.eq.s32.totalorder %s20, 0
      %p151 = por %p149, %p150
      %p152 = scmp.ne.s32.totalorder %s138, %s139
      %p153 = scmp.eq.s32.totalorder %s21, 1
      %p154 = por %p152, %p153
      %p156 = scmp.ne.s32.totalorder %s139, %s155
      %p157 = scmp.eq.s32.totalorder %s21, 0
      %p158 = por %p156, %p157
      %p159 = scmp.le.s32.totalorder 1, %s15
      %p160 = scmp.lt.s32.totalorder %s15, 3
      %p161 = pnand %p159, %p160
      %p162 = pneg %p161
      // Predicated region
      $region9: #{tpu_custom_call.1} parent=5 // pred_check
        _
      $region10: #{tpu_custom_call.1} parent=5 // pred_check_branch
        %164 = sbr.rel (%p161) target = $region12
      $region11: #{tpu_custom_call.1} parent=5 // pred_region
        %s165 = ssub.s32 %s15, 1
        // Predicated region
        $region13: #{tpu_custom_call.1} parent=11 // pred_check
          %p166 = pneg %p62
        $region14: #{tpu_custom_call.1} parent=11 // pred_check_branch
          %168 = sbr.rel (%p166) target = $region16
        $region15: #{tpu_custom_call.1} parent=11 // pred_region
          %s170 = ssub.s32 8192, 8192
          %171 = vsyncadd [#allocation3], %s170
          %s172 = sshll.u32 [#allocation2], 4
          %s173 = int_to_ptr.vmem [resolvable:$true] %s172
          %178 = dma.hbm_to_vmem [thread:$0]  %s1, 8192, %s173, [#allocation3], 64, 64, 4
        $region16: #{tpu_custom_call.1} parent=11 // pred_fallthru
          _
        // Predicated region
        $region17: #{tpu_custom_call.1} parent=11 // pred_check
          %p179 = pneg %p83
        $region18: #{tpu_custom_call.1} parent=11 // pred_check_branch
          %181 = sbr.rel (%p179) target = $region20
        $region19: #{tpu_custom_call.1} parent=11 // pred_region
          _
        $region20: #{tpu_custom_call.1} parent=11 // pred_fallthru
          _
        // Predicated region
        $region21: #{tpu_custom_call.1} parent=11 // pred_check
          %p182 = pneg %p104
        $region22: #{tpu_custom_call.1} parent=11 // pred_check_branch
          %184 = sbr.rel (%p182) target = $region24
        $region23: #{tpu_custom_call.1} parent=11 // pred_region
          _
        $region24: #{tpu_custom_call.1} parent=11 // pred_fallthru
          _
        // Predicated region
        $region25: #{tpu_custom_call.1} parent=11 // pred_check
          %p185 = pneg %p125
        $region26: #{tpu_custom_call.1} parent=11 // pred_check_branch
          %187 = sbr.rel (%p185) target = $region28
        $region27: #{tpu_custom_call.1} parent=11 // pred_region
          _
        $region28: #{tpu_custom_call.1} parent=11 // pred_fallthru
          _
      $region12: #{tpu_custom_call.1} parent=5 // pred_fallthru
        _
      %p188 = scmp.lt.s32.totalorder %s15, 2
      // Predicated region
      $region29: #{tpu_custom_call.1} parent=5 // pred_check
        %p189 = pneg %p188
      $region30: #{tpu_custom_call.1} parent=5 // pred_check_branch
        %191 = sbr.rel (%p189) target = $region32
      $region31: #{tpu_custom_call.1} parent=5 // pred_region
        // Predicated region
        $region33: #{tpu_custom_call.1} parent=31 // pred_check
          %p192 = pneg %p35
        $region34: #{tpu_custom_call.1} parent=31 // pred_check_branch
          %194 = sbr.rel (%p192) target = $region36
        $region35: #{tpu_custom_call.1} parent=31 // pred_region
          %s195 = smul.u32 16, %s15
          %p196 = scmp.lt.s32.totalorder %s195, 31
          %s197 = scalar_select %p196, %s195, 31
          %s198 = smul.addr %s197, 8
          %s199 = scalar_lea.vmem %s0, %s198
          %s200 = smul.u32 16, %s15
        $region36: #{tpu_custom_call.1} parent=31 // pred_fallthru
          _
      $region32: #{tpu_custom_call.1} parent=5 // pred_fallthru
        _
      %p201 = scmp.le.s32.totalorder 1, %s15
      %p202 = scmp.lt.s32.totalorder %s15, 3
      %p203 = pnand %p201, %p202
      %p204 = pneg %p203
      // Predicated region
      $region37: #{tpu_custom_call.1} parent=5 // pred_check
        _
      $region38: #{tpu_custom_call.1} parent=5 // pred_check_branch
        %206 = sbr.rel (%p203) target = $region40
      $region39: #{tpu_custom_call.1} parent=5 // pred_region
        %s207 = ssub.s32 %s15, 1
        // Predicated region
        $region41: #{tpu_custom_call.1} parent=39 // pred_check
          %p208 = pneg %p62
        $region42: #{tpu_custom_call.1} parent=39 // pred_check_branch
          %210 = sbr.rel (%p208) target = $region44
        $region43: #{tpu_custom_call.1} parent=39 // pred_region
          %211 = dma.done [#allocation3], 8192
        $region44: #{tpu_custom_call.1} parent=39 // pred_fallthru
          _
        %s212 = smul.u32 16, %s20
        %p213 = scmp.lt.s32.totalorder %s212, 31
        %s214 = scalar_select %p213, %s212, 31
        %s215 = smul.addr %s214, 8
        %s216 = scalar_lea.vmem %s0, %s215
        %p217 = pneg %p41
        %p218 = pneg %p38
        %p219 = pneg %p62
        %p220 = pneg %p59
        %p221 = pneg %p83
        %p222 = pneg %p80
        %p223 = pneg %p104
        %p224 = pneg %p101
        %p225 = pneg %p125
        %p226 = pneg %p122
        %p227 = pneg %p151
        %p228 = pneg %p148
        %s229 = sand.u32 %s138, 1
        %s230 = scalar_lea.sflag [#allocation4], %s229
        %s231 = sand.u32 %s138, 1
        %s232 = smul.addr %s231, 128
        %s233 = scalar_lea.vmem [#allocation5], %s232
        %s234 = smul.u32 16, %s20
        %p235 = scmp.lt.s32.totalorder %s234, 31
        %s236 = scalar_select %p235, %s234, 31
        %s237 = smul.addr %s236, 8
        %s238 = scalar_lea.vmem %s0, %s237
        %s239 = smul.u32 16, %s20
        %s240 = smul.u32 16, %s20
        %v242 = vld [vmem:[%s238] sm:$0xff]
        %v243 = vld [vmem:[%s238 + $0x8] sm:$0xff]
        %v244 = vld [vmem:[%s238 + $0x10] sm:$0xff]
        %v245 = vld [vmem:[%s238 + $0x18] sm:$0xff]
        %v246 = vld [vmem:[%s238 + $0x20] sm:$0xff]
        %v247 = vld [vmem:[%s238 + $0x28] sm:$0xff]
        %v248 = vld [vmem:[%s238 + $0x30] sm:$0xff]
        %v249 = vld [vmem:[%s238 + $0x38] sm:$0xff]
        %v250 = vld [vmem:[%s238 + $0x40] sm:$0xff]
        %v251 = vld [vmem:[%s238 + $0x48] sm:$0xff]
        %v252 = vld [vmem:[%s238 + $0x50] sm:$0xff]
        %v253 = vld [vmem:[%s238 + $0x58] sm:$0xff]
        %v254 = vld [vmem:[%s238 + $0x60] sm:$0xff]
        %v255 = vld [vmem:[%s238 + $0x68] sm:$0xff]
        %v256 = vld [vmem:[%s238 + $0x70] sm:$0xff]
        %v257 = vld [vmem:[%s238 + $0x78] sm:$0xff]
        %v258 = vlaneseq
        %v259 = vand.u32 %v258, 127
        %260 = vset.pattern.permute.xlu0 0
        %261 = vperm.xlu0 %260, %v242
        %v262 = vpop.permute.xlu0 %261
        %263 = vset.pattern.permute.xlu0 0
        %264 = vperm.xlu0 %263, %v243
        %v265 = vpop.permute.xlu0 %264
        %266 = vset.pattern.permute.xlu0 0
        %267 = vperm.xlu0 %266, %v244
        %v268 = vpop.permute.xlu0 %267
        %269 = vset.pattern.permute.xlu0 0
        %270 = vperm.xlu0 %269, %v245
        %v271 = vpop.permute.xlu0 %270
        %272 = vset.pattern.permute.xlu0 0
        %273 = vperm.xlu0 %272, %v246
        %v274 = vpop.permute.xlu0 %273
        %275 = vset.pattern.permute.xlu0 0
        %276 = vperm.xlu0 %275, %v247
        %v277 = vpop.permute.xlu0 %276
        %278 = vset.pattern.permute.xlu0 0
        %279 = vperm.xlu0 %278, %v248
        %v280 = vpop.permute.xlu0 %279
        %281 = vset.pattern.permute.xlu0 0
        %282 = vperm.xlu0 %281, %v249
        %v283 = vpop.permute.xlu0 %282
        %284 = vset.pattern.permute.xlu0 0
        %285 = vperm.xlu0 %284, %v250
        %v286 = vpop.permute.xlu0 %285
        %287 = vset.pattern.permute.xlu0 0
        %288 = vperm.xlu0 %287, %v251
        %v289 = vpop.permute.xlu0 %288
        %290 = vset.pattern.permute.xlu0 0
        %291 = vperm.xlu0 %290, %v252
        %v292 = vpop.permute.xlu0 %291
        %293 = vset.pattern.permute.xlu0 0
        %294 = vperm.xlu0 %293, %v253
        %v295 = vpop.permute.xlu0 %294
        %296 = vset.pattern.permute.xlu0 0
        %297 = vperm.xlu0 %296, %v254
        %v298 = vpop.permute.xlu0 %297
        %299 = vset.pattern.permute.xlu0 0
        %300 = vperm.xlu0 %299, %v255
        %v301 = vpop.permute.xlu0 %300
        %302 = vset.pattern.permute.xlu0 0
        %303 = vperm.xlu0 %302, %v256
        %v304 = vpop.permute.xlu0 %303
        %305 = vset.pattern.permute.xlu0 0
        %306 = vperm.xlu0 %305, %v257
        %v307 = vpop.permute.xlu0 %306
        %vm308 = vcmp.eq.s32.totalorder %v262, %v259
        %vm309 = vcmp.eq.s32.totalorder %v265, %v259
        %vm310 = vcmp.eq.s32.totalorder %v268, %v259
        %vm311 = vcmp.eq.s32.totalorder %v271, %v259
        %vm312 = vcmp.eq.s32.totalorder %v274, %v259
        %vm313 = vcmp.eq.s32.totalorder %v277, %v259
        %vm314 = vcmp.eq.s32.totalorder %v280, %v259
        %vm315 = vcmp.eq.s32.totalorder %v283, %v259
        %vm316 = vcmp.eq.s32.totalorder %v286, %v259
        %vm317 = vcmp.eq.s32.totalorder %v289, %v259
        %vm318 = vcmp.eq.s32.totalorder %v292, %v259
        %vm319 = vcmp.eq.s32.totalorder %v295, %v259
        %vm320 = vcmp.eq.s32.totalorder %v298, %v259
        %vm321 = vcmp.eq.s32.totalorder %v301, %v259
        %vm322 = vcmp.eq.s32.totalorder %v304, %v259
        %vm323 = vcmp.eq.s32.totalorder %v307, %v259
        %v324 = vsel %vm308, 1, 0
        %v325 = vsel %vm309, 1, 0
        %v326 = vsel %vm310, 1, 0
        %v327 = vsel %vm311, 1, 0
        %v328 = vsel %vm312, 1, 0
        %v329 = vsel %vm313, 1, 0
        %v330 = vsel %vm314, 1, 0
        %v331 = vsel %vm315, 1, 0
        %v332 = vsel %vm316, 1, 0
        %v333 = vsel %vm317, 1, 0
        %v334 = vsel %vm318, 1, 0
        %v335 = vsel %vm319, 1, 0
        %v336 = vsel %vm320, 1, 0
        %v337 = vsel %vm321, 1, 0
        %v338 = vsel %vm322, 1, 0
        %v339 = vsel %vm323, 1, 0
        %v340 = vcvt.s32.f32 %v324
        %v341 = vcvt.s32.f32 %v325
        %v342 = vcvt.s32.f32 %v326
        %v343 = vcvt.s32.f32 %v327
        %v344 = vcvt.s32.f32 %v328
        %v345 = vcvt.s32.f32 %v329
        %v346 = vcvt.s32.f32 %v330
        %v347 = vcvt.s32.f32 %v331
        %v348 = vcvt.s32.f32 %v332
        %v349 = vcvt.s32.f32 %v333
        %v350 = vcvt.s32.f32 %v334
        %v351 = vcvt.s32.f32 %v335
        %v352 = vcvt.s32.f32 %v336
        %v353 = vcvt.s32.f32 %v337
        %v354 = vcvt.s32.f32 %v338
        %v355 = vcvt.s32.f32 %v339
        %v356 = vpack.c.bf16 %v341, %v340
        %v357 = vpack.c.bf16 %v343, %v342
        %v358 = vpack.c.bf16 %v345, %v344
        %v359 = vpack.c.bf16 %v347, %v346
        %v360 = vpack.c.bf16 %v349, %v348
        %v361 = vpack.c.bf16 %v351, %v350
        %v362 = vpack.c.bf16 %v353, %v352
        %v363 = vpack.c.bf16 %v355, %v354
        %364 = vset.pattern.permute.xlu0 1
        %365 = vperm.xlu0 %364, %v242
        %v366 = vpop.permute.xlu0 %365
        %367 = vset.pattern.permute.xlu0 1
        %368 = vperm.xlu0 %367, %v243
        %v369 = vpop.permute.xlu0 %368
        %370 = vset.pattern.permute.xlu0 1
        %371 = vperm.xlu0 %370, %v244
        %v372 = vpop.permute.xlu0 %371
        %373 = vset.pattern.permute.xlu0 1
        %374 = vperm.xlu0 %373, %v245
        %v375 = vpop.permute.xlu0 %374
        %376 = vset.pattern.permute.xlu0 1
        %377 = vperm.xlu0 %376, %v246
        %v378 = vpop.permute.xlu0 %377
        %379 = vset.pattern.permute.xlu0 1
        %380 = vperm.xlu0 %379, %v247
        %v381 = vpop.permute.xlu0 %380
        %382 = vset.pattern.permute.xlu0 1
        %383 = vperm.xlu0 %382, %v248
        %v384 = vpop.permute.xlu0 %383
        %385 = vset.pattern.permute.xlu0 1
        %386 = vperm.xlu0 %385, %v249
        %v387 = vpop.permute.xlu0 %386
        %388 = vset.pattern.permute.xlu0 1
        %389 = vperm.xlu0 %388, %v250
        %v390 = vpop.permute.xlu0 %389
        %391 = vset.pattern.permute.xlu0 1
        %392 = vperm.xlu0 %391, %v251
        %v393 = vpop.permute.xlu0 %392
        %394 = vset.pattern.permute.xlu0 1
        %395 = vperm.xlu0 %394, %v252
        %v396 = vpop.permute.xlu0 %395
        %397 = vset.pattern.permute.xlu0 1
        %398 = vperm.xlu0 %397, %v253
        %v399 = vpop.permute.xlu0 %398
        %400 = vset.pattern.permute.xlu0 1
        %401 = vperm.xlu0 %400, %v254
        %v402 = vpop.permute.xlu0 %401
        %403 = vset.pattern.permute.xlu0 1
        %404 = vperm.xlu0 %403, %v255
        %v405 = vpop.permute.xlu0 %404
        %406 = vset.pattern.permute.xlu0 1
        %407 = vperm.xlu0 %406, %v256
        %v408 = vpop.permute.xlu0 %407
        %409 = vset.pattern.permute.xlu0 1
        %410 = vperm.xlu0 %409, %v257
        %v411 = vpop.permute.xlu0 %410
        %vm412 = vcmp.eq.s32.totalorder %v366, %v259
        %vm413 = vcmp.eq.s32.totalorder %v369, %v259
        %vm414 = vcmp.eq.s32.totalorder %v372, %v259
        %vm415 = vcmp.eq.s32.totalorder %v375, %v259
        %vm416 = vcmp.eq.s32.totalorder %v378, %v259
        %vm417 = vcmp.eq.s32.totalorder %v381, %v259
        %vm418 = vcmp.eq.s32.totalorder %v384, %v259
        %vm419 = vcmp.eq.s32.totalorder %v387, %v259
        %vm420 = vcmp.eq.s32.totalorder %v390, %v259
        %vm421 = vcmp.eq.s32.totalorder %v393, %v259
        %vm422 = vcmp.eq.s32.totalorder %v396, %v259
        %vm423 = vcmp.eq.s32.totalorder %v399, %v259
        %vm424 = vcmp.eq.s32.totalorder %v402, %v259
        %vm425 = vcmp.eq.s32.totalorder %v405, %v259
        %vm426 = vcmp.eq.s32.totalorder %v408, %v259
        %vm427 = vcmp.eq.s32.totalorder %v411, %v259
        %v428 = vsel %vm412, 1, 0
        %v429 = vsel %vm413, 1, 0
        %v430 = vsel %vm414, 1, 0
        %v431 = vsel %vm415, 1, 0
        %v432 = vsel %vm416, 1, 0
        %v433 = vsel %vm417, 1, 0
        %v434 = vsel %vm418, 1, 0
        %v435 = vsel %vm419, 1, 0
        %v436 = vsel %vm420, 1, 0
        %v437 = vsel %vm421, 1, 0
        %v438 = vsel %vm422, 1, 0
        %v439 = vsel %vm423, 1, 0
        %v440 = vsel %vm424, 1, 0
        %v441 = vsel %vm425, 1, 0
        %v442 = vsel %vm426, 1, 0
        %v443 = vsel %vm427, 1, 0
        %v444 = vcvt.s32.f32 %v428
        %v445 = vcvt.s32.f32 %v429
        %v446 = vcvt.s32.f32 %v430
        %v447 = vcvt.s32.f32 %v431
        %v448 = vcvt.s32.f32 %v432
        %v449 = vcvt.s32.f32 %v433
        %v450 = vcvt.s32.f32 %v434
        %v451 = vcvt.s32.f32 %v435
        %v452 = vcvt.s32.f32 %v436
        %v453 = vcvt.s32.f32 %v437
        %v454 = vcvt.s32.f32 %v438
        %v455 = vcvt.s32.f32 %v439
        %v456 = vcvt.s32.f32 %v440
        %v457 = vcvt.s32.f32 %v441
        %v458 = vcvt.s32.f32 %v442
        %v459 = vcvt.s32.f32 %v443
        %v460 = vpack.c.bf16 %v445, %v444
        %v461 = vpack.c.bf16 %v447, %v446
        %v462 = vpack.c.bf16 %v449, %v448
        %v463 = vpack.c.bf16 %v451, %v450
        %v464 = vpack.c.bf16 %v453, %v452
        %v465 = vpack.c.bf16 %v455, %v454
        %v466 = vpack.c.bf16 %v457, %v456
        %v467 = vpack.c.bf16 %v459, %v458
        %468 = vset.pattern.permute.xlu0 2
        %469 = vperm.xlu0 %468, %v242
        %v470 = vpop.permute.xlu0 %469
        %471 = vset.pattern.permute.xlu0 2
        %472 = vperm.xlu0 %471, %v243
        %v473 = vpop.permute.xlu0 %472
        %474 = vset.pattern.permute.xlu0 2
        %475 = vperm.xlu0 %474, %v244
        %v476 = vpop.permute.xlu0 %475
        %477 = vset.pattern.permute.xlu0 2
        %478 = vperm.xlu0 %477, %v245
        %v479 = vpop.permute.xlu0 %478
        %480 = vset.pattern.permute.xlu0 2
        %481 = vperm.xlu0 %480, %v246
        %v482 = vpop.permute.xlu0 %481
        %483 = vset.pattern.permute.xlu0 2
        %484 = vperm.xlu0 %483, %v247
        %v485 = vpop.permute.xlu0 %484
        %486 = vset.pattern.permute.xlu0 2
        %487 = vperm.xlu0 %486, %v248
        %v488 = vpop.permute.xlu0 %487
        %489 = vset.pattern.permute.xlu0 2
        %490 = vperm.xlu0 %489, %v249
        %v491 = vpop.permute.xlu0 %490
        %492 = vset.pattern.permute.xlu0 2
        %493 = vperm.xlu0 %492, %v250
        %v494 = vpop.permute.xlu0 %493
        %495 = vset.pattern.permute.xlu0 2
        %496 = vperm.xlu0 %495, %v251
        %v497 = vpop.permute.xlu0 %496
        %498 = vset.pattern.permute.xlu0 2
        %499 = vperm.xlu0 %498, %v252
        %v500 = vpop.permute.xlu0 %499
        %501 = vset.pattern.permute.xlu0 2
        %502 = vperm.xlu0 %501, %v253
        %v503 = vpop.permute.xlu0 %502
        %504 = vset.pattern.permute.xlu0 2
        %505 = vperm.xlu0 %504, %v254
        %v506 = vpop.permute.xlu0 %505
        %507 = vset.pattern.permute.xlu0 2
        %508 = vperm.xlu0 %507, %v255
        %v509 = vpop.permute.xlu0 %508
        %510 = vset.pattern.permute.xlu0 2
        %511 = vperm.xlu0 %510, %v256
        %v512 = vpop.permute.xlu0 %511
        %513 = vset.pattern.permute.xlu0 2
        %514 = vperm.xlu0 %513, %v257
        %v515 = vpop.permute.xlu0 %514
        %vm516 = vcmp.eq.s32.totalorder %v470, %v259
        %vm517 = vcmp.eq.s32.totalorder %v473, %v259
        %vm518 = vcmp.eq.s32.totalorder %v476, %v259
        %vm519 = vcmp.eq.s32.totalorder %v479, %v259
        %vm520 = vcmp.eq.s32.totalorder %v482, %v259
        %vm521 = vcmp.eq.s32.totalorder %v485, %v259
        %vm522 = vcmp.eq.s32.totalorder %v488, %v259
        %vm523 = vcmp.eq.s32.totalorder %v491, %v259
        %vm524 = vcmp.eq.s32.totalorder %v494, %v259
        %vm525 = vcmp.eq.s32.totalorder %v497, %v259
        %vm526 = vcmp.eq.s32.totalorder %v500, %v259
        %vm527 = vcmp.eq.s32.totalorder %v503, %v259
        %vm528 = vcmp.eq.s32.totalorder %v506, %v259
        %vm529 = vcmp.eq.s32.totalorder %v509, %v259
        %vm530 = vcmp.eq.s32.totalorder %v512, %v259
        %vm531 = vcmp.eq.s32.totalorder %v515, %v259
        %v532 = vsel %vm516, 1, 0
        %v533 = vsel %vm517, 1, 0
        %v534 = vsel %vm518, 1, 0
        %v535 = vsel %vm519, 1, 0
        %v536 = vsel %vm520, 1, 0
        %v537 = vsel %vm521, 1, 0
        %v538 = vsel %vm522, 1, 0
        %v539 = vsel %vm523, 1, 0
        %v540 = vsel %vm524, 1, 0
        %v541 = vsel %vm525, 1, 0
        %v542 = vsel %vm526, 1, 0
        %v543 = vsel %vm527, 1, 0
        %v544 = vsel %vm528, 1, 0
        %v545 = vsel %vm529, 1, 0
        %v546 = vsel %vm530, 1, 0
        %v547 = vsel %vm531, 1, 0
        %v548 = vcvt.s32.f32 %v532
        %v549 = vcvt.s32.f32 %v533
        %v550 = vcvt.s32.f32 %v534
        %v551 = vcvt.s32.f32 %v535
        %v552 = vcvt.s32.f32 %v536
        %v553 = vcvt.s32.f32 %v537
        %v554 = vcvt.s32.f32 %v538
        %v555 = vcvt.s32.f32 %v539
        %v556 = vcvt.s32.f32 %v540
        %v557 = vcvt.s32.f32 %v541
        %v558 = vcvt.s32.f32 %v542
        %v559 = vcvt.s32.f32 %v543
        %v560 = vcvt.s32.f32 %v544
        %v561 = vcvt.s32.f32 %v545
        %v562 = vcvt.s32.f32 %v546
        %v563 = vcvt.s32.f32 %v547
        %v564 = vpack.c.bf16 %v549, %v548
        %v565 = vpack.c.bf16 %v551, %v550
        %v566 = vpack.c.bf16 %v553, %v552
        %v567 = vpack.c.bf16 %v555, %v554
        %v568 = vpack.c.bf16 %v557, %v556
        %v569 = vpack.c.bf16 %v559, %v558
        %v570 = vpack.c.bf16 %v561, %v560
        %v571 = vpack.c.bf16 %v563, %v562
        %572 = vset.pattern.permute.xlu0 3
        %573 = vperm.xlu0 %572, %v242
        %v574 = vpop.permute.xlu0 %573
        %575 = vset.pattern.permute.xlu0 3
        %576 = vperm.xlu0 %575, %v243
        %v577 = vpop.permute.xlu0 %576
        %578 = vset.pattern.permute.xlu0 3
        %579 = vperm.xlu0 %578, %v244
        %v580 = vpop.permute.xlu0 %579
        %581 = vset.pattern.permute.xlu0 3
        %582 = vperm.xlu0 %581, %v245
        %v583 = vpop.permute.xlu0 %582
        %584 = vset.pattern.permute.xlu0 3
        %585 = vperm.xlu0 %584, %v246
        %v586 = vpop.permute.xlu0 %585
        %587 = vset.pattern.permute.xlu0 3
        %588 = vperm.xlu0 %587, %v247
        %v589 = vpop.permute.xlu0 %588
        %590 = vset.pattern.permute.xlu0 3
        %591 = vperm.xlu0 %590, %v248
        %v592 = vpop.permute.xlu0 %591
        %593 = vset.pattern.permute.xlu0 3
        %594 = vperm.xlu0 %593, %v249
        %v595 = vpop.permute.xlu0 %594
        %596 = vset.pattern.permute.xlu0 3
        %597 = vperm.xlu0 %596, %v250
        %v598 = vpop.permute.xlu0 %597
        %599 = vset.pattern.permute.xlu0 3
        %600 = vperm.xlu0 %599, %v251
        %v601 = vpop.permute.xlu0 %600
        %602 = vset.pattern.permute.xlu0 3
        %603 = vperm.xlu0 %602, %v252
        %v604 = vpop.permute.xlu0 %603
        %605 = vset.pattern.permute.xlu0 3
        %606 = vperm.xlu0 %605, %v253
        %v607 = vpop.permute.xlu0 %606
        %608 = vset.pattern.permute.xlu0 3
        %609 = vperm.xlu0 %608, %v254
        %v610 = vpop.permute.xlu0 %609
        %611 = vset.pattern.permute.xlu0 3
        %612 = vperm.xlu0 %611, %v255
        %v613 = vpop.permute.xlu0 %612
        %614 = vset.pattern.permute.xlu0 3
        %615 = vperm.xlu0 %614, %v256
        %v616 = vpop.permute.xlu0 %615
        %617 = vset.pattern.permute.xlu0 3
        %618 = vperm.xlu0 %617, %v257
        %v619 = vpop.permute.xlu0 %618
        %vm620 = vcmp.eq.s32.totalorder %v574, %v259
        %vm621 = vcmp.eq.s32.totalorder %v577, %v259
        %vm622 = vcmp.eq.s32.totalorder %v580, %v259
        %vm623 = vcmp.eq.s32.totalorder %v583, %v259
        %vm624 = vcmp.eq.s32.totalorder %v586, %v259
        %vm625 = vcmp.eq.s32.totalorder %v589, %v259
        %vm626 = vcmp.eq.s32.totalorder %v592, %v259
        %vm627 = vcmp.eq.s32.totalorder %v595, %v259
        %vm628 = vcmp.eq.s32.totalorder %v598, %v259
        %vm629 = vcmp.eq.s32.totalorder %v601, %v259
        %vm630 = vcmp.eq.s32.totalorder %v604, %v259
        %vm631 = vcmp.eq.s32.totalorder %v607, %v259
        %vm632 = vcmp.eq.s32.totalorder %v610, %v259
        %vm633 = vcmp.eq.s32.totalorder %v613, %v259
        %vm634 = vcmp.eq.s32.totalorder %v616, %v259
        %vm635 = vcmp.eq.s32.totalorder %v619, %v259
        %v636 = vsel %vm620, 1, 0
        %v637 = vsel %vm621, 1, 0
        %v638 = vsel %vm622, 1, 0
        %v639 = vsel %vm623, 1, 0
        %v640 = vsel %vm624, 1, 0
        %v641 = vsel %vm625, 1, 0
        %v642 = vsel %vm626, 1, 0
        %v643 = vsel %vm627, 1, 0
        %v644 = vsel %vm628, 1, 0
        %v645 = vsel %vm629, 1, 0
        %v646 = vsel %vm630, 1, 0
        %v647 = vsel %vm631, 1, 0
        %v648 = vsel %vm632, 1, 0
        %v649 = vsel %vm633, 1, 0
        %v650 = vsel %vm634, 1, 0
        %v651 = vsel %vm635, 1, 0
        %v652 = vcvt.s32.f32 %v636
        %v653 = vcvt.s32.f32 %v637
        %v654 = vcvt.s32.f32 %v638
        %v655 = vcvt.s32.f32 %v639
        %v656 = vcvt.s32.f32 %v640
        %v657 = vcvt.s32.f32 %v641
        %v658 = vcvt.s32.f32 %v642
        %v659 = vcvt.s32.f32 %v643
        %v660 = vcvt.s32.f32 %v644
        %v661 = vcvt.s32.f32 %v645
        %v662 = vcvt.s32.f32 %v646
        %v663 = vcvt.s32.f32 %v647
        %v664 = vcvt.s32.f32 %v648
        %v665 = vcvt.s32.f32 %v649
        %v666 = vcvt.s32.f32 %v650
        %v667 = vcvt.s32.f32 %v651
        %v668 = vpack.c.bf16 %v653, %v652
        %v669 = vpack.c.bf16 %v655, %v654
        %v670 = vpack.c.bf16 %v657, %v656
        %v671 = vpack.c.bf16 %v659, %v658
        %v672 = vpack.c.bf16 %v661, %v660
        %v673 = vpack.c.bf16 %v663, %v662
        %v674 = vpack.c.bf16 %v665, %v664
        %v675 = vpack.c.bf16 %v667, %v666
        %676 = vset.pattern.permute.xlu0 4
        %677 = vperm.xlu0 %676, %v242
        %v678 = vpop.permute.xlu0 %677
        %679 = vset.pattern.permute.xlu0 4
        %680 = vperm.xlu0 %679, %v243
        %v681 = vpop.permute.xlu0 %680
        %682 = vset.pattern.permute.xlu0 4
        %683 = vperm.xlu0 %682, %v244
        %v684 = vpop.permute.xlu0 %683
        %685 = vset.pattern.permute.xlu0 4
        %686 = vperm.xlu0 %685, %v245
        %v687 = vpop.permute.xlu0 %686
        %688 = vset.pattern.permute.xlu0 4
        %689 = vperm.xlu0 %688, %v246
        %v690 = vpop.permute.xlu0 %689
        %691 = vset.pattern.permute.xlu0 4
        %692 = vperm.xlu0 %691, %v247
        %v693 = vpop.permute.xlu0 %692
        %694 = vset.pattern.permute.xlu0 4
        %695 = vperm.xlu0 %694, %v248
        %v696 = vpop.permute.xlu0 %695
        %697 = vset.pattern.permute.xlu0 4
        %698 = vperm.xlu0 %697, %v249
        %v699 = vpop.permute.xlu0 %698
        %700 = vset.pattern.permute.xlu0 4
        %701 = vperm.xlu0 %700, %v250
        %v702 = vpop.permute.xlu0 %701
        %703 = vset.pattern.permute.xlu0 4
        %704 = vperm.xlu0 %703, %v251
        %v705 = vpop.permute.xlu0 %704
        %706 = vset.pattern.permute.xlu0 4
        %707 = vperm.xlu0 %706, %v252
        %v708 = vpop.permute.xlu0 %707
        %709 = vset.pattern.permute.xlu0 4
        %710 = vperm.xlu0 %709, %v253
        %v711 = vpop.permute.xlu0 %710
        %712 = vset.pattern.permute.xlu0 4
        %713 = vperm.xlu0 %712, %v254
        %v714 = vpop.permute.xlu0 %713
        %715 = vset.pattern.permute.xlu0 4
        %716 = vperm.xlu0 %715, %v255
        %v717 = vpop.permute.xlu0 %716
        %718 = vset.pattern.permute.xlu0 4
        %719 = vperm.xlu0 %718, %v256
        %v720 = vpop.permute.xlu0 %719
        %721 = vset.pattern.permute.xlu0 4
        %722 = vperm.xlu0 %721, %v257
        %v723 = vpop.permute.xlu0 %722
        %vm724 = vcmp.eq.s32.totalorder %v678, %v259
        %vm725 = vcmp.eq.s32.totalorder %v681, %v259
        %vm726 = vcmp.eq.s32.totalorder %v684, %v259
        %vm727 = vcmp.eq.s32.totalorder %v687, %v259
        %vm728 = vcmp.eq.s32.totalorder %v690, %v259
        %vm729 = vcmp.eq.s32.totalorder %v693, %v259
        %vm730 = vcmp.eq.s32.totalorder %v696, %v259
        %vm731 = vcmp.eq.s32.totalorder %v699, %v259
        %vm732 = vcmp.eq.s32.totalorder %v702, %v259
        %vm733 = vcmp.eq.s32.totalorder %v705, %v259
        %vm734 = vcmp.eq.s32.totalorder %v708, %v259
        %vm735 = vcmp.eq.s32.totalorder %v711, %v259
        %vm736 = vcmp.eq.s32.totalorder %v714, %v259
        %vm737 = vcmp.eq.s32.totalorder %v717, %v259
        %vm738 = vcmp.eq.s32.totalorder %v720, %v259
        %vm739 = vcmp.eq.s32.totalorder %v723, %v259
        %v740 = vsel %vm724, 1, 0
        %v741 = vsel %vm725, 1, 0
        %v742 = vsel %vm726, 1, 0
        %v743 = vsel %vm727, 1, 0
        %v744 = vsel %vm728, 1, 0
        %v745 = vsel %vm729, 1, 0
        %v746 = vsel %vm730, 1, 0
        %v747 = vsel %vm731, 1, 0
        %v748 = vsel %vm732, 1, 0
        %v749 = vsel %vm733, 1, 0
        %v750 = vsel %vm734, 1, 0
        %v751 = vsel %vm735, 1, 0
        %v752 = vsel %vm736, 1, 0
        %v753 = vsel %vm737, 1, 0
        %v754 = vsel %vm738, 1, 0
        %v755 = vsel %vm739, 1, 0
        %v756 = vcvt.s32.f32 %v740
        %v757 = vcvt.s32.f32 %v741
        %v758 = vcvt.s32.f32 %v742
        %v759 = vcvt.s32.f32 %v743
        %v760 = vcvt.s32.f32 %v744
        %v761 = vcvt.s32.f32 %v745
        %v762 = vcvt.s32.f32 %v746
        %v763 = vcvt.s32.f32 %v747
        %v764 = vcvt.s32.f32 %v748
        %v765 = vcvt.s32.f32 %v749
        %v766 = vcvt.s32.f32 %v750
        %v767 = vcvt.s32.f32 %v751
        %v768 = vcvt.s32.f32 %v752
        %v769 = vcvt.s32.f32 %v753
        %v770 = vcvt.s32.f32 %v754
        %v771 = vcvt.s32.f32 %v755
        %v772 = vpack.c.bf16 %v757, %v756
        %v773 = vpack.c.bf16 %v759, %v758
        %v774 = vpack.c.bf16 %v761, %v760
        %v775 = vpack.c.bf16 %v763, %v762
        %v776 = vpack.c.bf16 %v765, %v764
        %v777 = vpack.c.bf16 %v767, %v766
        %v778 = vpack.c.bf16 %v769, %v768
        %v779 = vpack.c.bf16 %v771, %v770
        %780 = vset.pattern.permute.xlu0 5
        %781 = vperm.xlu0 %780, %v242
        %v782 = vpop.permute.xlu0 %781
        %783 = vset.pattern.permute.xlu0 5
        %784 = vperm.xlu0 %783, %v243
        %v785 = vpop.permute.xlu0 %784
        %786 = vset.pattern.permute.xlu0 5
        %787 = vperm.xlu0 %786, %v244
        %v788 = vpop.permute.xlu0 %787
        %789 = vset.pattern.permute.xlu0 5
        %790 = vperm.xlu0 %789, %v245
        %v791 = vpop.permute.xlu0 %790
        %792 = vset.pattern.permute.xlu0 5
        %793 = vperm.xlu0 %792, %v246
        %v794 = vpop.permute.xlu0 %793
        %795 = vset.pattern.permute.xlu0 5
        %796 = vperm.xlu0 %795, %v247
        %v797 = vpop.permute.xlu0 %796
        %798 = vset.pattern.permute.xlu0 5
        %799 = vperm.xlu0 %798, %v248
        %v800 = vpop.permute.xlu0 %799
        %801 = vset.pattern.permute.xlu0 5
        %802 = vperm.xlu0 %801, %v249
        %v803 = vpop.permute.xlu0 %802
        %804 = vset.pattern.permute.xlu0 5
        %805 = vperm.xlu0 %804, %v250
        %v806 = vpop.permute.xlu0 %805
        %807 = vset.pattern.permute.xlu0 5
        %808 = vperm.xlu0 %807, %v251
        %v809 = vpop.permute.xlu0 %808
        %810 = vset.pattern.permute.xlu0 5
        %811 = vperm.xlu0 %810, %v252
        %v812 = vpop.permute.xlu0 %811
        %813 = vset.pattern.permute.xlu0 5
        %814 = vperm.xlu0 %813, %v253
        %v815 = vpop.permute.xlu0 %814
        %816 = vset.pattern.permute.xlu0 5
        %817 = vperm.xlu0 %816, %v254
        %v818 = vpop.permute.xlu0 %817
        %819 = vset.pattern.permute.xlu0 5
        %820 = vperm.xlu0 %819, %v255
        %v821 = vpop.permute.xlu0 %820
        %822 = vset.pattern.permute.xlu0 5
        %823 = vperm.xlu0 %822, %v256
        %v824 = vpop.permute.xlu0 %823
        %825 = vset.pattern.permute.xlu0 5
        %826 = vperm.xlu0 %825, %v257
        %v827 = vpop.permute.xlu0 %826
        %vm828 = vcmp.eq.s32.totalorder %v782, %v259
        %vm829 = vcmp.eq.s32.totalorder %v785, %v259
        %vm830 = vcmp.eq.s32.totalorder %v788, %v259
        %vm831 = vcmp.eq.s32.totalorder %v791, %v259
        %vm832 = vcmp.eq.s32.totalorder %v794, %v259
        %vm833 = vcmp.eq.s32.totalorder %v797, %v259
        %vm834 = vcmp.eq.s32.totalorder %v800, %v259
        %vm835 = vcmp.eq.s32.totalorder %v803, %v259
        %vm836 = vcmp.eq.s32.totalorder %v806, %v259
        %vm837 = vcmp.eq.s32.totalorder %v809, %v259
        %vm838 = vcmp.eq.s32.totalorder %v812, %v259
        %vm839 = vcmp.eq.s32.totalorder %v815, %v259
        %vm840 = vcmp.eq.s32.totalorder %v818, %v259
        %vm841 = vcmp.eq.s32.totalorder %v821, %v259
        %vm842 = vcmp.eq.s32.totalorder %v824, %v259
        %vm843 = vcmp.eq.s32.totalorder %v827, %v259
        %v844 = vsel %vm828, 1, 0
        %v845 = vsel %vm829, 1, 0
        %v846 = vsel %vm830, 1, 0
        %v847 = vsel %vm831, 1, 0
        %v848 = vsel %vm832, 1, 0
        %v849 = vsel %vm833, 1, 0
        %v850 = vsel %vm834, 1, 0
        %v851 = vsel %vm835, 1, 0
        %v852 = vsel %vm836, 1, 0
        %v853 = vsel %vm837, 1, 0
        %v854 = vsel %vm838, 1, 0
        %v855 = vsel %vm839, 1, 0
        %v856 = vsel %vm840, 1, 0
        %v857 = vsel %vm841, 1, 0
        %v858 = vsel %vm842, 1, 0
        %v859 = vsel %vm843, 1, 0
        %v860 = vcvt.s32.f32 %v844
        %v861 = vcvt.s32.f32 %v845
        %v862 = vcvt.s32.f32 %v846
        %v863 = vcvt.s32.f32 %v847
        %v864 = vcvt.s32.f32 %v848
        %v865 = vcvt.s32.f32 %v849
        %v866 = vcvt.s32.f32 %v850
        %v867 = vcvt.s32.f32 %v851
        %v868 = vcvt.s32.f32 %v852
        %v869 = vcvt.s32.f32 %v853
        %v870 = vcvt.s32.f32 %v854
        %v871 = vcvt.s32.f32 %v855
        %v872 = vcvt.s32.f32 %v856
        %v873 = vcvt.s32.f32 %v857
        %v874 = vcvt.s32.f32 %v858
        %v875 = vcvt.s32.f32 %v859
        %v876 = vpack.c.bf16 %v861, %v860
        %v877 = vpack.c.bf16 %v863, %v862
        %v878 = vpack.c.bf16 %v865, %v864
        %v879 = vpack.c.bf16 %v867, %v866
        %v880 = vpack.c.bf16 %v869, %v868
        %v881 = vpack.c.bf16 %v871, %v870
        %v882 = vpack.c.bf16 %v873, %v872
        %v883 = vpack.c.bf16 %v875, %v874
        %884 = vset.pattern.permute.xlu0 6
        %885 = vperm.xlu0 %884, %v242
        %v886 = vpop.permute.xlu0 %885
        %887 = vset.pattern.permute.xlu0 6
        %888 = vperm.xlu0 %887, %v243
        %v889 = vpop.permute.xlu0 %888
        %890 = vset.pattern.permute.xlu0 6
        %891 = vperm.xlu0 %890, %v244
        %v892 = vpop.permute.xlu0 %891
        %893 = vset.pattern.permute.xlu0 6
        %894 = vperm.xlu0 %893, %v245
        %v895 = vpop.permute.xlu0 %894
        %896 = vset.pattern.permute.xlu0 6
        %897 = vperm.xlu0 %896, %v246
        %v898 = vpop.permute.xlu0 %897
        %899 = vset.pattern.permute.xlu0 6
        %900 = vperm.xlu0 %899, %v247
        %v901 = vpop.permute.xlu0 %900
        %902 = vset.pattern.permute.xlu0 6
        %903 = vperm.xlu0 %902, %v248
        %v904 = vpop.permute.xlu0 %903
        %905 = vset.pattern.permute.xlu0 6
        %906 = vperm.xlu0 %905, %v249
        %v907 = vpop.permute.xlu0 %906
        %908 = vset.pattern.permute.xlu0 6
        %909 = vperm.xlu0 %908, %v250
        %v910 = vpop.permute.xlu0 %909
        %911 = vset.pattern.permute.xlu0 6
        %912 = vperm.xlu0 %911, %v251
        %v913 = vpop.permute.xlu0 %912
        %914 = vset.pattern.permute.xlu0 6
        %915 = vperm.xlu0 %914, %v252
        %v916 = vpop.permute.xlu0 %915
        %917 = vset.pattern.permute.xlu0 6
        %918 = vperm.xlu0 %917, %v253
        %v919 = vpop.permute.xlu0 %918
        %920 = vset.pattern.permute.xlu0 6
        %921 = vperm.xlu0 %920, %v254
        %v922 = vpop.permute.xlu0 %921
        %923 = vset.pattern.permute.xlu0 6
        %924 = vperm.xlu0 %923, %v255
        %v925 = vpop.permute.xlu0 %924
        %926 = vset.pattern.permute.xlu0 6
        %927 = vperm.xlu0 %926, %v256
        %v928 = vpop.permute.xlu0 %927
        %929 = vset.pattern.permute.xlu0 6
        %930 = vperm.xlu0 %929, %v257
        %v931 = vpop.permute.xlu0 %930
        %vm932 = vcmp.eq.s32.totalorder %v886, %v259
        %vm933 = vcmp.eq.s32.totalorder %v889, %v259
        %vm934 = vcmp.eq.s32.totalorder %v892, %v259
        %vm935 = vcmp.eq.s32.totalorder %v895, %v259
        %vm936 = vcmp.eq.s32.totalorder %v898, %v259
        %vm937 = vcmp.eq.s32.totalorder %v901, %v259
        %vm938 = vcmp.eq.s32.totalorder %v904, %v259
        %vm939 = vcmp.eq.s32.totalorder %v907, %v259
        %vm940 = vcmp.eq.s32.totalorder %v910, %v259
        %vm941 = vcmp.eq.s32.totalorder %v913, %v259
        %vm942 = vcmp.eq.s32.totalorder %v916, %v259
        %vm943 = vcmp.eq.s32.totalorder %v919, %v259
        %vm944 = vcmp.eq.s32.totalorder %v922, %v259
        %vm945 = vcmp.eq.s32.totalorder %v925, %v259
        %vm946 = vcmp.eq.s32.totalorder %v928, %v259
        %vm947 = vcmp.eq.s32.totalorder %v931, %v259
        %v948 = vsel %vm932, 1, 0
        %v949 = vsel %vm933, 1, 0
        %v950 = vsel %vm934, 1, 0
        %v951 = vsel %vm935, 1, 0
        %v952 = vsel %vm936, 1, 0
        %v953 = vsel %vm937, 1, 0
        %v954 = vsel %vm938, 1, 0
        %v955 = vsel %vm939, 1, 0
        %v956 = vsel %vm940, 1, 0
        %v957 = vsel %vm941, 1, 0
        %v958 = vsel %vm942, 1, 0
        %v959 = vsel %vm943, 1, 0
        %v960 = vsel %vm944, 1, 0
        %v961 = vsel %vm945, 1, 0
        %v962 = vsel %vm946, 1, 0
        %v963 = vsel %vm947, 1, 0
        %v964 = vcvt.s32.f32 %v948
        %v965 = vcvt.s32.f32 %v949
        %v966 = vcvt.s32.f32 %v950
        %v967 = vcvt.s32.f32 %v951
        %v968 = vcvt.s32.f32 %v952
        %v969 = vcvt.s32.f32 %v953
        %v970 = vcvt.s32.f32 %v954
        %v971 = vcvt.s32.f32 %v955
        %v972 = vcvt.s32.f32 %v956
        %v973 = vcvt.s32.f32 %v957
        %v974 = vcvt.s32.f32 %v958
        %v975 = vcvt.s32.f32 %v959
        %v976 = vcvt.s32.f32 %v960
        %v977 = vcvt.s32.f32 %v961
        %v978 = vcvt.s32.f32 %v962
        %v979 = vcvt.s32.f32 %v963
        %v980 = vpack.c.bf16 %v965, %v964
        %v981 = vpack.c.bf16 %v967, %v966
        %v982 = vpack.c.bf16 %v969, %v968
        %v983 = vpack.c.bf16 %v971, %v970
        %v984 = vpack.c.bf16 %v973, %v972
        %v985 = vpack.c.bf16 %v975, %v974
        %v986 = vpack.c.bf16 %v977, %v976
        %v987 = vpack.c.bf16 %v979, %v978
        %988 = vset.pattern.permute.xlu0 7
        %989 = vperm.xlu0 %988, %v242
        %v990 = vpop.permute.xlu0 %989
        %991 = vset.pattern.permute.xlu0 7
        %992 = vperm.xlu0 %991, %v243
        %v993 = vpop.permute.xlu0 %992
        %994 = vset.pattern.permute.xlu0 7
        %995 = vperm.xlu0 %994, %v244
        %v996 = vpop.permute.xlu0 %995
        %997 = vset.pattern.permute.xlu0 7
        %998 = vperm.xlu0 %997, %v245
        %v999 = vpop.permute.xlu0 %998
        %1000 = vset.pattern.permute.xlu0 7
        %1001 = vperm.xlu0 %1000, %v246
        %v1002 = vpop.permute.xlu0 %1001
        %1003 = vset.pattern.permute.xlu0 7
        %1004 = vperm.xlu0 %1003, %v247
        %v1005 = vpop.permute.xlu0 %1004
        %1006 = vset.pattern.permute.xlu0 7
        %1007 = vperm.xlu0 %1006, %v248
        %v1008 = vpop.permute.xlu0 %1007
        %1009 = vset.pattern.permute.xlu0 7
        %1010 = vperm.xlu0 %1009, %v249
        %v1011 = vpop.permute.xlu0 %1010
        %1012 = vset.pattern.permute.xlu0 7
        %1013 = vperm.xlu0 %1012, %v250
        %v1014 = vpop.permute.xlu0 %1013
        %1015 = vset.pattern.permute.xlu0 7
        %1016 = vperm.xlu0 %1015, %v251
        %v1017 = vpop.permute.xlu0 %1016
        %1018 = vset.pattern.permute.xlu0 7
        %1019 = vperm.xlu0 %1018, %v252
        %v1020 = vpop.permute.xlu0 %1019
        %1021 = vset.pattern.permute.xlu0 7
        %1022 = vperm.xlu0 %1021, %v253
        %v1023 = vpop.permute.xlu0 %1022
        %1024 = vset.pattern.permute.xlu0 7
        %1025 = vperm.xlu0 %1024, %v254
        %v1026 = vpop.permute.xlu0 %1025
        %1027 = vset.pattern.permute.xlu0 7
        %1028 = vperm.xlu0 %1027, %v255
        %v1029 = vpop.permute.xlu0 %1028
        %1030 = vset.pattern.permute.xlu0 7
        %1031 = vperm.xlu0 %1030, %v256
        %v1032 = vpop.permute.xlu0 %1031
        %1033 = vset.pattern.permute.xlu0 7
        %1034 = vperm.xlu0 %1033, %v257
        %v1035 = vpop.permute.xlu0 %1034
        %vm1036 = vcmp.eq.s32.totalorder %v990, %v259
        %vm1037 = vcmp.eq.s32.totalorder %v993, %v259
        %vm1038 = vcmp.eq.s32.totalorder %v996, %v259
        %vm1039 = vcmp.eq.s32.totalorder %v999, %v259
        %vm1040 = vcmp.eq.s32.totalorder %v1002, %v259
        %vm1041 = vcmp.eq.s32.totalorder %v1005, %v259
        %vm1042 = vcmp.eq.s32.totalorder %v1008, %v259
        %vm1043 = vcmp.eq.s32.totalorder %v1011, %v259
        %vm1044 = vcmp.eq.s32.totalorder %v1014, %v259
        %vm1045 = vcmp.eq.s32.totalorder %v1017, %v259
        %vm1046 = vcmp.eq.s32.totalorder %v1020, %v259
        %vm1047 = vcmp.eq.s32.totalorder %v1023, %v259
        %vm1048 = vcmp.eq.s32.totalorder %v1026, %v259
        %vm1049 = vcmp.eq.s32.totalorder %v1029, %v259
        %vm1050 = vcmp.eq.s32.totalorder %v1032, %v259
        %vm1051 = vcmp.eq.s32.totalorder %v1035, %v259
        %v1052 = vsel %vm1036, 1, 0
        %v1053 = vsel %vm1037, 1, 0
        %v1054 = vsel %vm1038, 1, 0
        %v1055 = vsel %vm1039, 1, 0
        %v1056 = vsel %vm1040, 1, 0
        %v1057 = vsel %vm1041, 1, 0
        %v1058 = vsel %vm1042, 1, 0
        %v1059 = vsel %vm1043, 1, 0
        %v1060 = vsel %vm1044, 1, 0
        %v1061 = vsel %vm1045, 1, 0
        %v1062 = vsel %vm1046, 1, 0
        %v1063 = vsel %vm1047, 1, 0
        %v1064 = vsel %vm1048, 1, 0
        %v1065 = vsel %vm1049, 1, 0
        %v1066 = vsel %vm1050, 1, 0
        %v1067 = vsel %vm1051, 1, 0
        %v1068 = vcvt.s32.f32 %v1052
        %v1069 = vcvt.s32.f32 %v1053
        %v1070 = vcvt.s32.f32 %v1054
        %v1071 = vcvt.s32.f32 %v1055
        %v1072 = vcvt.s32.f32 %v1056
        %v1073 = vcvt.s32.f32 %v1057
        %v1074 = vcvt.s32.f32 %v1058
        %v1075 = vcvt.s32.f32 %v1059
        %v1076 = vcvt.s32.f32 %v1060
        %v1077 = vcvt.s32.f32 %v1061
        %v1078 = vcvt.s32.f32 %v1062
        %v1079 = vcvt.s32.f32 %v1063
        %v1080 = vcvt.s32.f32 %v1064
        %v1081 = vcvt.s32.f32 %v1065
        %v1082 = vcvt.s32.f32 %v1066
        %v1083 = vcvt.s32.f32 %v1067
        %v1084 = vpack.c.bf16 %v1069, %v1068
        %v1085 = vpack.c.bf16 %v1071, %v1070
        %v1086 = vpack.c.bf16 %v1073, %v1072
        %v1087 = vpack.c.bf16 %v1075, %v1074
        %v1088 = vpack.c.bf16 %v1077, %v1076
        %v1089 = vpack.c.bf16 %v1079, %v1078
        %v1090 = vpack.c.bf16 %v1081, %v1080
        %v1091 = vpack.c.bf16 %v1083, %v1082
        %v1092 = vld [vmem:[#allocation2] sm:$0xf]
        %v1093 = vld [vmem:[#allocation2 + $0x4] sm:$0xf]
        %v1094 = vld [vmem:[#allocation2 + $0x8] sm:$0xf]
        %v1095 = vld [vmem:[#allocation2 + $0xc] sm:$0xf]
        %v1096 = vld [vmem:[#allocation2 + $0x10] sm:$0xf]
        %v1097 = vld [vmem:[#allocation2 + $0x14] sm:$0xf]
        %v1098 = vld [vmem:[#allocation2 + $0x18] sm:$0xf]
        %v1099 = vld [vmem:[#allocation2 + $0x1c] sm:$0xf]
        %v1100 = vld [vmem:[#allocation2 + $0x20] sm:$0xf]
        %v1101 = vld [vmem:[#allocation2 + $0x24] sm:$0xf]
        %v1102 = vld [vmem:[#allocation2 + $0x28] sm:$0xf]
        %v1103 = vld [vmem:[#allocation2 + $0x2c] sm:$0xf]
        %v1104 = vld [vmem:[#allocation2 + $0x30] sm:$0xf]
        %v1105 = vld [vmem:[#allocation2 + $0x34] sm:$0xf]
        %v1106 = vld [vmem:[#allocation2 + $0x38] sm:$0xf]
        %v1107 = vld [vmem:[#allocation2 + $0x3c] sm:$0xf]
        %v1108 = vld [vmem:[#allocation2 + $0x40] sm:$0xf]
        %v1109 = vld [vmem:[#allocation2 + $0x44] sm:$0xf]
        %v1110 = vld [vmem:[#allocation2 + $0x48] sm:$0xf]
        %v1111 = vld [vmem:[#allocation2 + $0x4c] sm:$0xf]
        %v1112 = vld [vmem:[#allocation2 + $0x50] sm:$0xf]
        %v1113 = vld [vmem:[#allocation2 + $0x54] sm:$0xf]
        %v1114 = vld [vmem:[#allocation2 + $0x58] sm:$0xf]
        %v1115 = vld [vmem:[#allocation2 + $0x5c] sm:$0xf]
        %v1116 = vld [vmem:[#allocation2 + $0x60] sm:$0xf]
        %v1117 = vld [vmem:[#allocation2 + $0x64] sm:$0xf]
        %v1118 = vld [vmem:[#allocation2 + $0x68] sm:$0xf]
        %v1119 = vld [vmem:[#allocation2 + $0x6c] sm:$0xf]
        %v1120 = vld [vmem:[#allocation2 + $0x70] sm:$0xf]
        %v1121 = vld [vmem:[#allocation2 + $0x74] sm:$0xf]
        %v1122 = vld [vmem:[#allocation2 + $0x78] sm:$0xf]
        %v1123 = vld [vmem:[#allocation2 + $0x7c] sm:$0xf]
        %v1124 = vld [vmem:[#allocation2 + $0x80] sm:$0xf]
        %v1125 = vld [vmem:[#allocation2 + $0x84] sm:$0xf]
        %v1126 = vld [vmem:[#allocation2 + $0x88] sm:$0xf]
        %v1127 = vld [vmem:[#allocation2 + $0x8c] sm:$0xf]
        %v1128 = vld [vmem:[#allocation2 + $0x90] sm:$0xf]
        %v1129 = vld [vmem:[#allocation2 + $0x94] sm:$0xf]
        %v1130 = vld [vmem:[#allocation2 + $0x98] sm:$0xf]
        %v1131 = vld [vmem:[#allocation2 + $0x9c] sm:$0xf]
        %v1132 = vld [vmem:[#allocation2 + $0xa0] sm:$0xf]
        %v1133 = vld [vmem:[#allocation2 + $0xa4] sm:$0xf]
        %v1134 = vld [vmem:[#allocation2 + $0xa8] sm:$0xf]
        %v1135 = vld [vmem:[#allocation2 + $0xac] sm:$0xf]
        %v1136 = vld [vmem:[#allocation2 + $0xb0] sm:$0xf]
        %v1137 = vld [vmem:[#allocation2 + $0xb4] sm:$0xf]
        %v1138 = vld [vmem:[#allocation2 + $0xb8] sm:$0xf]
        %v1139 = vld [vmem:[#allocation2 + $0xbc] sm:$0xf]
        %v1140 = vld [vmem:[#allocation2 + $0xc0] sm:$0xf]
        %v1141 = vld [vmem:[#allocation2 + $0xc4] sm:$0xf]
        %v1142 = vld [vmem:[#allocation2 + $0xc8] sm:$0xf]
        %v1143 = vld [vmem:[#allocation2 + $0xcc] sm:$0xf]
        %v1144 = vld [vmem:[#allocation2 + $0xd0] sm:$0xf]
        %v1145 = vld [vmem:[#allocation2 + $0xd4] sm:$0xf]
        %v1146 = vld [vmem:[#allocation2 + $0xd8] sm:$0xf]
        %v1147 = vld [vmem:[#allocation2 + $0xdc] sm:$0xf]
        %v1148 = vld [vmem:[#allocation2 + $0xe0] sm:$0xf]
        %v1149 = vld [vmem:[#allocation2 + $0xe4] sm:$0xf]
        %v1150 = vld [vmem:[#allocation2 + $0xe8] sm:$0xf]
        %v1151 = vld [vmem:[#allocation2 + $0xec] sm:$0xf]
        %v1152 = vld [vmem:[#allocation2 + $0xf0] sm:$0xf]
        %v1153 = vld [vmem:[#allocation2 + $0xf4] sm:$0xf]
        %v1154 = vld [vmem:[#allocation2 + $0xf8] sm:$0xf]
        %v1155 = vld [vmem:[#allocation2 + $0xfc] sm:$0xf]
        %v1156 = vld [vmem:[#allocation2 + $0x100] sm:$0xf]
        %v1157 = vld [vmem:[#allocation2 + $0x104] sm:$0xf]
        %v1158 = vld [vmem:[#allocation2 + $0x108] sm:$0xf]
        %v1159 = vld [vmem:[#allocation2 + $0x10c] sm:$0xf]
        %v1160 = vld [vmem:[#allocation2 + $0x110] sm:$0xf]
        %v1161 = vld [vmem:[#allocation2 + $0x114] sm:$0xf]
        %v1162 = vld [vmem:[#allocation2 + $0x118] sm:$0xf]
        %v1163 = vld [vmem:[#allocation2 + $0x11c] sm:$0xf]
        %v1164 = vld [vmem:[#allocation2 + $0x120] sm:$0xf]
        %v1165 = vld [vmem:[#allocation2 + $0x124] sm:$0xf]
        %v1166 = vld [vmem:[#allocation2 + $0x128] sm:$0xf]
        %v1167 = vld [vmem:[#allocation2 + $0x12c] sm:$0xf]
        %v1168 = vld [vmem:[#allocation2 + $0x130] sm:$0xf]
        %v1169 = vld [vmem:[#allocation2 + $0x134] sm:$0xf]
        %v1170 = vld [vmem:[#allocation2 + $0x138] sm:$0xf]
        %v1171 = vld [vmem:[#allocation2 + $0x13c] sm:$0xf]
        %v1172 = vld [vmem:[#allocation2 + $0x140] sm:$0xf]
        %v1173 = vld [vmem:[#allocation2 + $0x144] sm:$0xf]
        %v1174 = vld [vmem:[#allocation2 + $0x148] sm:$0xf]
        %v1175 = vld [vmem:[#allocation2 + $0x14c] sm:$0xf]
        %v1176 = vld [vmem:[#allocation2 + $0x150] sm:$0xf]
        %v1177 = vld [vmem:[#allocation2 + $0x154] sm:$0xf]
        %v1178 = vld [vmem:[#allocation2 + $0x158] sm:$0xf]
        %v1179 = vld [vmem:[#allocation2 + $0x15c] sm:$0xf]
        %v1180 = vld [vmem:[#allocation2 + $0x160] sm:$0xf]
        %v1181 = vld [vmem:[#allocation2 + $0x164] sm:$0xf]
        %v1182 = vld [vmem:[#allocation2 + $0x168] sm:$0xf]
        %v1183 = vld [vmem:[#allocation2 + $0x16c] sm:$0xf]
        %v1184 = vld [vmem:[#allocation2 + $0x170] sm:$0xf]
        %v1185 = vld [vmem:[#allocation2 + $0x174] sm:$0xf]
        %v1186 = vld [vmem:[#allocation2 + $0x178] sm:$0xf]
        %v1187 = vld [vmem:[#allocation2 + $0x17c] sm:$0xf]
        %v1188 = vld [vmem:[#allocation2 + $0x180] sm:$0xf]
        %v1189 = vld [vmem:[#allocation2 + $0x184] sm:$0xf]
        %v1190 = vld [vmem:[#allocation2 + $0x188] sm:$0xf]
        %v1191 = vld [vmem:[#allocation2 + $0x18c] sm:$0xf]
        %v1192 = vld [vmem:[#allocation2 + $0x190] sm:$0xf]
        %v1193 = vld [vmem:[#allocation2 + $0x194] sm:$0xf]
        %v1194 = vld [vmem:[#allocation2 + $0x198] sm:$0xf]
        %v1195 = vld [vmem:[#allocation2 + $0x19c] sm:$0xf]
        %v1196 = vld [vmem:[#allocation2 + $0x1a0] sm:$0xf]
        %v1197 = vld [vmem:[#allocation2 + $0x1a4] sm:$0xf]
        %v1198 = vld [vmem:[#allocation2 + $0x1a8] sm:$0xf]
        %v1199 = vld [vmem:[#allocation2 + $0x1ac] sm:$0xf]
        %v1200 = vld [vmem:[#allocation2 + $0x1b0] sm:$0xf]
        %v1201 = vld [vmem:[#allocation2 + $0x1b4] sm:$0xf]
        %v1202 = vld [vmem:[#allocation2 + $0x1b8] sm:$0xf]
        %v1203 = vld [vmem:[#allocation2 + $0x1bc] sm:$0xf]
        %v1204 = vld [vmem:[#allocation2 + $0x1c0] sm:$0xf]
        %v1205 = vld [vmem:[#allocation2 + $0x1c4] sm:$0xf]
        %v1206 = vld [vmem:[#allocation2 + $0x1c8] sm:$0xf]
        %v1207 = vld [vmem:[#allocation2 + $0x1cc] sm:$0xf]
        %v1208 = vld [vmem:[#allocation2 + $0x1d0] sm:$0xf]
        %v1209 = vld [vmem:[#allocation2 + $0x1d4] sm:$0xf]
        %v1210 = vld [vmem:[#allocation2 + $0x1d8] sm:$0xf]
        %v1211 = vld [vmem:[#allocation2 + $0x1dc] sm:$0xf]
        %v1212 = vld [vmem:[#allocation2 + $0x1e0] sm:$0xf]
        %v1213 = vld [vmem:[#allocation2 + $0x1e4] sm:$0xf]
        %v1214 = vld [vmem:[#allocation2 + $0x1e8] sm:$0xf]
        %v1215 = vld [vmem:[#allocation2 + $0x1ec] sm:$0xf]
        %v1216 = vld [vmem:[#allocation2 + $0x1f0] sm:$0xf]
        %v1217 = vld [vmem:[#allocation2 + $0x1f4] sm:$0xf]
        %v1218 = vld [vmem:[#allocation2 + $0x1f8] sm:$0xf]
        %v1219 = vld [vmem:[#allocation2 + $0x1fc] sm:$0xf]
        %v1220 = vld [vmem:[%s2] sm:$0x1]
        %v1222 = vlaneseq
        %v1223 = vshrl.u32 %v1222, 7
        %v1224 = vsub.s32 0, %v1223
        %v1225 = vrot.slane %v1220, %v1224
        %v1355 = vunpack.c.l.b16 %v1092
        %v1356 = vunpack.c.l.b16 %v1093
        %v1357 = vunpack.c.l.b16 %v1094
        %v1358 = vunpack.c.l.b16 %v1095
        %v1359 = vunpack.c.l.b16 %v1096
        %v1360 = vunpack.c.l.b16 %v1097
        %v1361 = vunpack.c.l.b16 %v1098
        %v1362 = vunpack.c.l.b16 %v1099
        %v1363 = vunpack.c.l.b16 %v1100
        %v1364 = vunpack.c.l.b16 %v1101
        %v1365 = vunpack.c.l.b16 %v1102
        %v1366 = vunpack.c.l.b16 %v1103
        %v1367 = vunpack.c.l.b16 %v1104
        %v1368 = vunpack.c.l.b16 %v1105
        %v1369 = vunpack.c.l.b16 %v1106
        %v1370 = vunpack.c.l.b16 %v1107
        %v1371 = vunpack.c.l.b16 %v1108
        %v1372 = vunpack.c.l.b16 %v1109
        %v1373 = vunpack.c.l.b16 %v1110
        %v1374 = vunpack.c.l.b16 %v1111
        %v1375 = vunpack.c.l.b16 %v1112
        %v1376 = vunpack.c.l.b16 %v1113
        %v1377 = vunpack.c.l.b16 %v1114
        %v1378 = vunpack.c.l.b16 %v1115
        %v1379 = vunpack.c.l.b16 %v1116
        %v1380 = vunpack.c.l.b16 %v1117
        %v1381 = vunpack.c.l.b16 %v1118
        %v1382 = vunpack.c.l.b16 %v1119
        %v1383 = vunpack.c.l.b16 %v1120
        %v1384 = vunpack.c.l.b16 %v1121
        %v1385 = vunpack.c.l.b16 %v1122
        %v1386 = vunpack.c.l.b16 %v1123
        %v1387 = vunpack.c.l.b16 %v1124
        %v1388 = vunpack.c.l.b16 %v1125
        %v1389 = vunpack.c.l.b16 %v1126
        %v1390 = vunpack.c.l.b16 %v1127
        %v1391 = vunpack.c.l.b16 %v1128
        %v1392 = vunpack.c.l.b16 %v1129
        %v1393 = vunpack.c.l.b16 %v1130
        %v1394 = vunpack.c.l.b16 %v1131
        %v1395 = vunpack.c.l.b16 %v1132
        %v1396 = vunpack.c.l.b16 %v1133
        %v1397 = vunpack.c.l.b16 %v1134
        %v1398 = vunpack.c.l.b16 %v1135
        %v1399 = vunpack.c.l.b16 %v1136
        %v1400 = vunpack.c.l.b16 %v1137
        %v1401 = vunpack.c.l.b16 %v1138
        %v1402 = vunpack.c.l.b16 %v1139
        %v1403 = vunpack.c.l.b16 %v1140
        %v1404 = vunpack.c.l.b16 %v1141
        %v1405 = vunpack.c.l.b16 %v1142
        %v1406 = vunpack.c.l.b16 %v1143
        %v1407 = vunpack.c.l.b16 %v1144
        %v1408 = vunpack.c.l.b16 %v1145
        %v1409 = vunpack.c.l.b16 %v1146
        %v1410 = vunpack.c.l.b16 %v1147
        %v1411 = vunpack.c.l.b16 %v1148
        %v1412 = vunpack.c.l.b16 %v1149
        %v1413 = vunpack.c.l.b16 %v1150
        %v1414 = vunpack.c.l.b16 %v1151
        %v1415 = vunpack.c.l.b16 %v1152
        %v1416 = vunpack.c.l.b16 %v1153
        %v1417 = vunpack.c.l.b16 %v1154
        %v1418 = vunpack.c.l.b16 %v1155
        %v1419 = vunpack.c.l.b16 %v1156
        %v1420 = vunpack.c.l.b16 %v1157
        %v1421 = vunpack.c.l.b16 %v1158
        %v1422 = vunpack.c.l.b16 %v1159
        %v1423 = vunpack.c.l.b16 %v1160
        %v1424 = vunpack.c.l.b16 %v1161
        %v1425 = vunpack.c.l.b16 %v1162
        %v1426 = vunpack.c.l.b16 %v1163
        %v1427 = vunpack.c.l.b16 %v1164
        %v1428 = vunpack.c.l.b16 %v1165
        %v1429 = vunpack.c.l.b16 %v1166
        %v1430 = vunpack.c.l.b16 %v1167
        %v1431 = vunpack.c.l.b16 %v1168
        %v1432 = vunpack.c.l.b16 %v1169
        %v1433 = vunpack.c.l.b16 %v1170
        %v1434 = vunpack.c.l.b16 %v1171
        %v1435 = vunpack.c.l.b16 %v1172
        %v1436 = vunpack.c.l.b16 %v1173
        %v1437 = vunpack.c.l.b16 %v1174
        %v1438 = vunpack.c.l.b16 %v1175
        %v1439 = vunpack.c.l.b16 %v1176
        %v1440 = vunpack.c.l.b16 %v1177
        %v1441 = vunpack.c.l.b16 %v1178
        %v1442 = vunpack.c.l.b16 %v1179
        %v1443 = vunpack.c.l.b16 %v1180
        %v1444 = vunpack.c.l.b16 %v1181
        %v1445 = vunpack.c.l.b16 %v1182
        %v1446 = vunpack.c.l.b16 %v1183
        %v1447 = vunpack.c.l.b16 %v1184
        %v1448 = vunpack.c.l.b16 %v1185
        %v1449 = vunpack.c.l.b16 %v1186
        %v1450 = vunpack.c.l.b16 %v1187
        %v1451 = vunpack.c.l.b16 %v1188
        %v1452 = vunpack.c.l.b16 %v1189
        %v1453 = vunpack.c.l.b16 %v1190
        %v1454 = vunpack.c.l.b16 %v1191
        %v1455 = vunpack.c.l.b16 %v1192
        %v1456 = vunpack.c.l.b16 %v1193
        %v1457 = vunpack.c.l.b16 %v1194
        %v1458 = vunpack.c.l.b16 %v1195
        %v1459 = vunpack.c.l.b16 %v1196
        %v1460 = vunpack.c.l.b16 %v1197
        %v1461 = vunpack.c.l.b16 %v1198
        %v1462 = vunpack.c.l.b16 %v1199
        %v1463 = vunpack.c.l.b16 %v1200
        %v1464 = vunpack.c.l.b16 %v1201
        %v1465 = vunpack.c.l.b16 %v1202
        %v1466 = vunpack.c.l.b16 %v1203
        %v1467 = vunpack.c.l.b16 %v1204
        %v1468 = vunpack.c.l.b16 %v1205
        %v1469 = vunpack.c.l.b16 %v1206
        %v1470 = vunpack.c.l.b16 %v1207
        %v1471 = vunpack.c.l.b16 %v1208
        %v1472 = vunpack.c.l.b16 %v1209
        %v1473 = vunpack.c.l.b16 %v1210
        %v1474 = vunpack.c.l.b16 %v1211
        %v1475 = vunpack.c.l.b16 %v1212
        %v1476 = vunpack.c.l.b16 %v1213
        %v1477 = vunpack.c.l.b16 %v1214
        %v1478 = vunpack.c.l.b16 %v1215
        %v1479 = vunpack.c.l.b16 %v1216
        %v1480 = vunpack.c.l.b16 %v1217
        %v1481 = vunpack.c.l.b16 %v1218
        %v1482 = vunpack.c.l.b16 %v1219
        %v1483 = vpack.c.b16 %v1356, %v1355
        %v1484 = vpack.c.b16 %v1358, %v1357
        %v1485 = vpack.c.b16 %v1360, %v1359
        %v1486 = vpack.c.b16 %v1362, %v1361
        %v1487 = vpack.c.b16 %v1364, %v1363
        %v1488 = vpack.c.b16 %v1366, %v1365
        %v1489 = vpack.c.b16 %v1368, %v1367
        %v1490 = vpack.c.b16 %v1370, %v1369
        %v1491 = vpack.c.b16 %v1372, %v1371
        %v1492 = vpack.c.b16 %v1374, %v1373
        %v1493 = vpack.c.b16 %v1376, %v1375
        %v1494 = vpack.c.b16 %v1378, %v1377
        %v1495 = vpack.c.b16 %v1380, %v1379
        %v1496 = vpack.c.b16 %v1382, %v1381
        %v1497 = vpack.c.b16 %v1384, %v1383
        %v1498 = vpack.c.b16 %v1386, %v1385
        %v1499 = vpack.c.b16 %v1388, %v1387
        %v1500 = vpack.c.b16 %v1390, %v1389
        %v1501 = vpack.c.b16 %v1392, %v1391
        %v1502 = vpack.c.b16 %v1394, %v1393
        %v1503 = vpack.c.b16 %v1396, %v1395
        %v1504 = vpack.c.b16 %v1398, %v1397
        %v1505 = vpack.c.b16 %v1400, %v1399
        %v1506 = vpack.c.b16 %v1402, %v1401
        %v1507 = vpack.c.b16 %v1404, %v1403
        %v1508 = vpack.c.b16 %v1406, %v1405
        %v1509 = vpack.c.b16 %v1408, %v1407
        %v1510 = vpack.c.b16 %v1410, %v1409
        %v1511 = vpack.c.b16 %v1412, %v1411
        %v1512 = vpack.c.b16 %v1414, %v1413
        %v1513 = vpack.c.b16 %v1416, %v1415
        %v1514 = vpack.c.b16 %v1418, %v1417
        %v1515 = vpack.c.b16 %v1420, %v1419
        %v1516 = vpack.c.b16 %v1422, %v1421
        %v1517 = vpack.c.b16 %v1424, %v1423
        %v1518 = vpack.c.b16 %v1426, %v1425
        %v1519 = vpack.c.b16 %v1428, %v1427
        %v1520 = vpack.c.b16 %v1430, %v1429
        %v1521 = vpack.c.b16 %v1432, %v1431
        %v1522 = vpack.c.b16 %v1434, %v1433
        %v1523 = vpack.c.b16 %v1436, %v1435
        %v1524 = vpack.c.b16 %v1438, %v1437
        %v1525 = vpack.c.b16 %v1440, %v1439
        %v1526 = vpack.c.b16 %v1442, %v1441
        %v1527 = vpack.c.b16 %v1444, %v1443
        %v1528 = vpack.c.b16 %v1446, %v1445
        %v1529 = vpack.c.b16 %v1448, %v1447
        %v1530 = vpack.c.b16 %v1450, %v1449
        %v1531 = vpack.c.b16 %v1452, %v1451
        %v1532 = vpack.c.b16 %v1454, %v1453
        %v1533 = vpack.c.b16 %v1456, %v1455
        %v1534 = vpack.c.b16 %v1458, %v1457
        %v1535 = vpack.c.b16 %v1460, %v1459
        %v1536 = vpack.c.b16 %v1462, %v1461
        %v1537 = vpack.c.b16 %v1464, %v1463
        %v1538 = vpack.c.b16 %v1466, %v1465
        %v1539 = vpack.c.b16 %v1468, %v1467
        %v1540 = vpack.c.b16 %v1470, %v1469
        %v1541 = vpack.c.b16 %v1472, %v1471
        %v1542 = vpack.c.b16 %v1474, %v1473
        %v1543 = vpack.c.b16 %v1476, %v1475
        %v1544 = vpack.c.b16 %v1478, %v1477
        %v1545 = vpack.c.b16 %v1480, %v1479
        %v1546 = vpack.c.b16 %v1482, %v1481
        %1611 = vmatprep.subr.bf16.mxu0 0
        %1612 = vmatpush1.bf16.msra.mxu0 %v1490
        %1613 = vmatprep.subr.bf16.mxu0 0
        %1614 = vmatpush1.bf16.msra.mxu0 %v1489
        %1615 = vmatprep.subr.bf16.mxu0 0
        %1616 = vmatpush1.bf16.msra.mxu0 %v1488
        %1617 = vmatprep.subr.bf16.mxu0 0
        %1618 = vmatpush1.bf16.msra.mxu0 %v1487
        %1619 = vmatprep.subr.bf16.mxu0 0
        %1620 = vmatpush1.bf16.msra.mxu0 %v1486
        %1621 = vmatprep.subr.bf16.mxu0 0
        %1622 = vmatpush1.bf16.msra.mxu0 %v1485
        %1623 = vmatprep.subr.bf16.mxu0 0
        %1624 = vmatpush1.bf16.msra.mxu0 %v1484
        %1625 = vmatprep.subr.bf16.mxu0 0
        %1626 = vmatpush1.bf16.msra.mxu0 %v1483
        %1627 = vmatprep.subr.bf16.mxu0 0
        %1628 = vmatpush2.bf16.msra.mxu0 %v1498
        %1629 = vmatprep.subr.bf16.mxu0 0
        %1630 = vmatpush2.bf16.msra.mxu0 %v1497
        %1631 = vmatprep.subr.bf16.mxu0 0
        %1632 = vmatpush2.bf16.msra.mxu0 %v1496
        %1633 = vmatprep.subr.bf16.mxu0 0
        %1634 = vmatpush2.bf16.msra.mxu0 %v1495
        %1635 = vmatprep.subr.bf16.mxu0 0
        %1636 = vmatpush2.bf16.msra.mxu0 %v1494
        %1637 = vmatprep.subr.bf16.mxu0 0
        %1638 = vmatpush2.bf16.msra.mxu0 %v1493
        %1639 = vmatprep.subr.bf16.mxu0 0
        %1640 = vmatpush2.bf16.msra.mxu0 %v1492
        %1641 = vmatprep.subr.bf16.mxu0 0
        %1642 = vmatpush2.bf16.msra.mxu0 %v1491
        %1643 = vmatprep.mubr.bf16.mxu0 %v460
        %1644 = vmatmul.mubr.bf16.gmra.mxu0 %v356
        %v1645 = vpop.f32.mrf.mxu0
        %v1646 = vadd.f32 %v1225, %v1645
        %v1647 = vpop.f32.mrf.mxu0
        %v1648 = vpop.f32.mrf.mxu0
        %v1649 = vadd.f32 %v1225, %v1648
        %v1650 = vpop.f32.mrf.mxu0
        %1651 = vmatprep.mubr.bf16.mxu0 %v461
        %1652 = vmatmul.mubr.bf16.gmra.mxu0 %v357
        %v1653 = vpop.f32.mrf.mxu0
        %v1654 = vadd.f32 %v1225, %v1653
        %v1655 = vpop.f32.mrf.mxu0
        %v1656 = vpop.f32.mrf.mxu0
        %v1657 = vadd.f32 %v1225, %v1656
        %v1658 = vpop.f32.mrf.mxu0
        %1659 = vmatprep.mubr.bf16.mxu0 %v462
        %1660 = vmatmul.mubr.bf16.gmra.mxu0 %v358
        %v1661 = vpop.f32.mrf.mxu0
        %v1662 = vadd.f32 %v1225, %v1661
        %v1663 = vpop.f32.mrf.mxu0
        %v1664 = vpop.f32.mrf.mxu0
        %v1665 = vadd.f32 %v1225, %v1664
        %v1666 = vpop.f32.mrf.mxu0
        %1667 = vmatprep.mubr.bf16.mxu0 %v463
        %1668 = vmatmul.mubr.bf16.gmra.mxu0 %v359
        %v1669 = vpop.f32.mrf.mxu0
        %v1670 = vadd.f32 %v1225, %v1669
        %v1671 = vpop.f32.mrf.mxu0
        %v1672 = vpop.f32.mrf.mxu0
        %v1673 = vadd.f32 %v1225, %v1672
        %v1674 = vpop.f32.mrf.mxu0
        %1675 = vmatprep.mubr.bf16.mxu0 %v464
        %1676 = vmatmul.mubr.bf16.gmra.mxu0 %v360
        %v1677 = vpop.f32.mrf.mxu0
        %v1678 = vadd.f32 %v1225, %v1677
        %v1679 = vpop.f32.mrf.mxu0
        %v1680 = vpop.f32.mrf.mxu0
        %v1681 = vadd.f32 %v1225, %v1680
        %v1682 = vpop.f32.mrf.mxu0
        %1683 = vmatprep.mubr.bf16.mxu0 %v465
        %1684 = vmatmul.mubr.bf16.gmra.mxu0 %v361
        %v1685 = vpop.f32.mrf.mxu0
        %v1686 = vadd.f32 %v1225, %v1685
        %v1687 = vpop.f32.mrf.mxu0
        %v1688 = vpop.f32.mrf.mxu0
        %v1689 = vadd.f32 %v1225, %v1688
        %v1690 = vpop.f32.mrf.mxu0
        %1691 = vmatprep.mubr.bf16.mxu0 %v466
        %1692 = vmatmul.mubr.bf16.gmra.mxu0 %v362
        %v1693 = vpop.f32.mrf.mxu0
        %v1694 = vadd.f32 %v1225, %v1693
        %v1695 = vpop.f32.mrf.mxu0
        %v1696 = vpop.f32.mrf.mxu0
        %v1697 = vadd.f32 %v1225, %v1696
        %v1698 = vpop.f32.mrf.mxu0
        %1699 = vmatprep.mubr.bf16.mxu0 %v467
        %1700 = vmatmul.mubr.bf16.gmra.mxu0 %v363
        %v1701 = vpop.f32.mrf.mxu0
        %v1702 = vadd.f32 %v1225, %v1701
        %v1703 = vpop.f32.mrf.mxu0
        %v1704 = vpop.f32.mrf.mxu0
        %v1705 = vadd.f32 %v1225, %v1704
        %v1706 = vpop.f32.mrf.mxu0
        %1707 = vdwg.mxu0
        %1708 = vmatprep.subr.bf16.mxu0 0
        %1709 = vmatpush1.bf16.msra.mxu0 %v1506
        %1710 = vmatprep.subr.bf16.mxu0 0
        %1711 = vmatpush1.bf16.msra.mxu0 %v1505
        %1712 = vmatprep.subr.bf16.mxu0 0
        %1713 = vmatpush1.bf16.msra.mxu0 %v1504
        %1714 = vmatprep.subr.bf16.mxu0 0
        %1715 = vmatpush1.bf16.msra.mxu0 %v1503
        %1716 = vmatprep.subr.bf16.mxu0 0
        %1717 = vmatpush1.bf16.msra.mxu0 %v1502
        %1718 = vmatprep.subr.bf16.mxu0 0
        %1719 = vmatpush1.bf16.msra.mxu0 %v1501
        %1720 = vmatprep.subr.bf16.mxu0 0
        %1721 = vmatpush1.bf16.msra.mxu0 %v1500
        %1722 = vmatprep.subr.bf16.mxu0 0
        %1723 = vmatpush1.bf16.msra.mxu0 %v1499
        %1724 = vmatprep.subr.bf16.mxu0 0
        %1725 = vmatpush2.bf16.msra.mxu0 %v1514
        %1726 = vmatprep.subr.bf16.mxu0 0
        %1727 = vmatpush2.bf16.msra.mxu0 %v1513
        %1728 = vmatprep.subr.bf16.mxu0 0
        %1729 = vmatpush2.bf16.msra.mxu0 %v1512
        %1730 = vmatprep.subr.bf16.mxu0 0
        %1731 = vmatpush2.bf16.msra.mxu0 %v1511
        %1732 = vmatprep.subr.bf16.mxu0 0
        %1733 = vmatpush2.bf16.msra.mxu0 %v1510
        %1734 = vmatprep.subr.bf16.mxu0 0
        %1735 = vmatpush2.bf16.msra.mxu0 %v1509
        %1736 = vmatprep.subr.bf16.mxu0 0
        %1737 = vmatpush2.bf16.msra.mxu0 %v1508
        %1738 = vmatprep.subr.bf16.mxu0 0
        %1739 = vmatpush2.bf16.msra.mxu0 %v1507
        %1740 = vmatprep.mubr.bf16.mxu0 %v668
        %1741 = vmatmul.mubr.bf16.gmra.mxu0 %v564
        %v1742 = vpop.f32.mrf.mxu0
        %v1743 = vadd.f32 %v1646, %v1742
        %v1744 = vpop.f32.mrf.mxu0
        %v1745 = vpop.f32.mrf.mxu0
        %v1746 = vadd.f32 %v1649, %v1745
        %v1747 = vpop.f32.mrf.mxu0
        %1748 = vmatprep.mubr.bf16.mxu0 %v669
        %1749 = vmatmul.mubr.bf16.gmra.mxu0 %v565
        %v1750 = vpop.f32.mrf.mxu0
        %v1751 = vadd.f32 %v1654, %v1750
        %v1752 = vpop.f32.mrf.mxu0
        %v1753 = vpop.f32.mrf.mxu0
        %v1754 = vadd.f32 %v1657, %v1753
        %v1755 = vpop.f32.mrf.mxu0
        %1756 = vmatprep.mubr.bf16.mxu0 %v670
        %1757 = vmatmul.mubr.bf16.gmra.mxu0 %v566
        %v1758 = vpop.f32.mrf.mxu0
        %v1759 = vadd.f32 %v1662, %v1758
        %v1760 = vpop.f32.mrf.mxu0
        %v1761 = vpop.f32.mrf.mxu0
        %v1762 = vadd.f32 %v1665, %v1761
        %v1763 = vpop.f32.mrf.mxu0
        %1764 = vmatprep.mubr.bf16.mxu0 %v671
        %1765 = vmatmul.mubr.bf16.gmra.mxu0 %v567
        %v1766 = vpop.f32.mrf.mxu0
        %v1767 = vadd.f32 %v1670, %v1766
        %v1768 = vpop.f32.mrf.mxu0
        %v1769 = vpop.f32.mrf.mxu0
        %v1770 = vadd.f32 %v1673, %v1769
        %v1771 = vpop.f32.mrf.mxu0
        %1772 = vmatprep.mubr.bf16.mxu0 %v672
        %1773 = vmatmul.mubr.bf16.gmra.mxu0 %v568
        %v1774 = vpop.f32.mrf.mxu0
        %v1775 = vadd.f32 %v1678, %v1774
        %v1776 = vpop.f32.mrf.mxu0
        %v1777 = vpop.f32.mrf.mxu0
        %v1778 = vadd.f32 %v1681, %v1777
        %v1779 = vpop.f32.mrf.mxu0
        %1780 = vmatprep.mubr.bf16.mxu0 %v673
        %1781 = vmatmul.mubr.bf16.gmra.mxu0 %v569
        %v1782 = vpop.f32.mrf.mxu0
        %v1783 = vadd.f32 %v1686, %v1782
        %v1784 = vpop.f32.mrf.mxu0
        %v1785 = vpop.f32.mrf.mxu0
        %v1786 = vadd.f32 %v1689, %v1785
        %v1787 = vpop.f32.mrf.mxu0
        %1788 = vmatprep.mubr.bf16.mxu0 %v674
        %1789 = vmatmul.mubr.bf16.gmra.mxu0 %v570
        %v1790 = vpop.f32.mrf.mxu0
        %v1791 = vadd.f32 %v1694, %v1790
        %v1792 = vpop.f32.mrf.mxu0
        %v1793 = vpop.f32.mrf.mxu0
        %v1794 = vadd.f32 %v1697, %v1793
        %v1795 = vpop.f32.mrf.mxu0
        %1796 = vmatprep.mubr.bf16.mxu0 %v675
        %1797 = vmatmul.mubr.bf16.gmra.mxu0 %v571
        %v1798 = vpop.f32.mrf.mxu0
        %v1799 = vadd.f32 %v1702, %v1798
        %v1800 = vpop.f32.mrf.mxu0
        %v1801 = vpop.f32.mrf.mxu0
        %v1802 = vadd.f32 %v1705, %v1801
        %v1803 = vpop.f32.mrf.mxu0
        %1804 = vdwg.mxu0
        %1805 = vmatprep.subr.bf16.mxu0 0
        %1806 = vmatpush1.bf16.msra.mxu0 %v1522
        %1807 = vmatprep.subr.bf16.mxu0 0
        %1808 = vmatpush1.bf16.msra.mxu0 %v1521
        %1809 = vmatprep.subr.bf16.mxu0 0
        %1810 = vmatpush1.bf16.msra.mxu0 %v1520
        %1811 = vmatprep.subr.bf16.mxu0 0
        %1812 = vmatpush1.bf16.msra.mxu0 %v1519
        %1813 = vmatprep.subr.bf16.mxu0 0
        %1814 = vmatpush1.bf16.msra.mxu0 %v1518
        %1815 = vmatprep.subr.bf16.mxu0 0
        %1816 = vmatpush1.bf16.msra.mxu0 %v1517
        %1817 = vmatprep.subr.bf16.mxu0 0
        %1818 = vmatpush1.bf16.msra.mxu0 %v1516
        %1819 = vmatprep.subr.bf16.mxu0 0
        %1820 = vmatpush1.bf16.msra.mxu0 %v1515
        %1821 = vmatprep.subr.bf16.mxu0 0
        %1822 = vmatpush2.bf16.msra.mxu0 %v1530
        %1823 = vmatprep.subr.bf16.mxu0 0
        %1824 = vmatpush2.bf16.msra.mxu0 %v1529
        %1825 = vmatprep.subr.bf16.mxu0 0
        %1826 = vmatpush2.bf16.msra.mxu0 %v1528
        %1827 = vmatprep.subr.bf16.mxu0 0
        %1828 = vmatpush2.bf16.msra.mxu0 %v1527
        %1829 = vmatprep.subr.bf16.mxu0 0
        %1830 = vmatpush2.bf16.msra.mxu0 %v1526
        %1831 = vmatprep.subr.bf16.mxu0 0
        %1832 = vmatpush2.bf16.msra.mxu0 %v1525
        %1833 = vmatprep.subr.bf16.mxu0 0
        %1834 = vmatpush2.bf16.msra.mxu0 %v1524
        %1835 = vmatprep.subr.bf16.mxu0 0
        %1836 = vmatpush2.bf16.msra.mxu0 %v1523
        %1837 = vmatprep.mubr.bf16.mxu0 %v876
        %1838 = vmatmul.mubr.bf16.gmra.mxu0 %v772
        %v1839 = vpop.f32.mrf.mxu0
        %v1840 = vadd.f32 %v1743, %v1839
        %v1841 = vpop.f32.mrf.mxu0
        %v1842 = vpop.f32.mrf.mxu0
        %v1843 = vadd.f32 %v1746, %v1842
        %v1844 = vpop.f32.mrf.mxu0
        %1845 = vmatprep.mubr.bf16.mxu0 %v877
        %1846 = vmatmul.mubr.bf16.gmra.mxu0 %v773
        %v1847 = vpop.f32.mrf.mxu0
        %v1848 = vadd.f32 %v1751, %v1847
        %v1849 = vpop.f32.mrf.mxu0
        %v1850 = vpop.f32.mrf.mxu0
        %v1851 = vadd.f32 %v1754, %v1850
        %v1852 = vpop.f32.mrf.mxu0
        %1853 = vmatprep.mubr.bf16.mxu0 %v878
        %1854 = vmatmul.mubr.bf16.gmra.mxu0 %v774
        %v1855 = vpop.f32.mrf.mxu0
        %v1856 = vadd.f32 %v1759, %v1855
        %v1857 = vpop.f32.mrf.mxu0
        %v1858 = vpop.f32.mrf.mxu0
        %v1859 = vadd.f32 %v1762, %v1858
        %v1860 = vpop.f32.mrf.mxu0
        %1861 = vmatprep.mubr.bf16.mxu0 %v879
        %1862 = vmatmul.mubr.bf16.gmra.mxu0 %v775
        %v1863 = vpop.f32.mrf.mxu0
        %v1864 = vadd.f32 %v1767, %v1863
        %v1865 = vpop.f32.mrf.mxu0
        %v1866 = vpop.f32.mrf.mxu0
        %v1867 = vadd.f32 %v1770, %v1866
        %v1868 = vpop.f32.mrf.mxu0
        %1869 = vmatprep.mubr.bf16.mxu0 %v880
        %1870 = vmatmul.mubr.bf16.gmra.mxu0 %v776
        %v1871 = vpop.f32.mrf.mxu0
        %v1872 = vadd.f32 %v1775, %v1871
        %v1873 = vpop.f32.mrf.mxu0
        %v1874 = vpop.f32.mrf.mxu0
        %v1875 = vadd.f32 %v1778, %v1874
        %v1876 = vpop.f32.mrf.mxu0
        %1877 = vmatprep.mubr.bf16.mxu0 %v881
        %1878 = vmatmul.mubr.bf16.gmra.mxu0 %v777
        %v1879 = vpop.f32.mrf.mxu0
        %v1880 = vadd.f32 %v1783, %v1879
        %v1881 = vpop.f32.mrf.mxu0
        %v1882 = vpop.f32.mrf.mxu0
        %v1883 = vadd.f32 %v1786, %v1882
        %v1884 = vpop.f32.mrf.mxu0
        %1885 = vmatprep.mubr.bf16.mxu0 %v882
        %1886 = vmatmul.mubr.bf16.gmra.mxu0 %v778
        %v1887 = vpop.f32.mrf.mxu0
        %v1888 = vadd.f32 %v1791, %v1887
        %v1889 = vpop.f32.mrf.mxu0
        %v1890 = vpop.f32.mrf.mxu0
        %v1891 = vadd.f32 %v1794, %v1890
        %v1892 = vpop.f32.mrf.mxu0
        %1893 = vmatprep.mubr.bf16.mxu0 %v883
        %1894 = vmatmul.mubr.bf16.gmra.mxu0 %v779
        %v1895 = vpop.f32.mrf.mxu0
        %v1896 = vadd.f32 %v1799, %v1895
        %v1897 = vpop.f32.mrf.mxu0
        %v1898 = vpop.f32.mrf.mxu0
        %v1899 = vadd.f32 %v1802, %v1898
        %v1900 = vpop.f32.mrf.mxu0
        %1901 = vdwg.mxu0
        %1902 = vmatprep.subr.bf16.mxu0 0
        %1903 = vmatpush1.bf16.msra.mxu0 %v1538
        %1904 = vmatprep.subr.bf16.mxu0 0
        %1905 = vmatpush1.bf16.msra.mxu0 %v1537
        %1906 = vmatprep.subr.bf16.mxu0 0
        %1907 = vmatpush1.bf16.msra.mxu0 %v1536
        %1908 = vmatprep.subr.bf16.mxu0 0
        %1909 = vmatpush1.bf16.msra.mxu0 %v1535
        %1910 = vmatprep.subr.bf16.mxu0 0
        %1911 = vmatpush1.bf16.msra.mxu0 %v1534
        %1912 = vmatprep.subr.bf16.mxu0 0
        %1913 = vmatpush1.bf16.msra.mxu0 %v1533
        %1914 = vmatprep.subr.bf16.mxu0 0
        %1915 = vmatpush1.bf16.msra.mxu0 %v1532
        %1916 = vmatprep.subr.bf16.mxu0 0
        %1917 = vmatpush1.bf16.msra.mxu0 %v1531
        %1918 = vmatprep.subr.bf16.mxu0 0
        %1919 = vmatpush2.bf16.msra.mxu0 %v1546
        %1920 = vmatprep.subr.bf16.mxu0 0
        %1921 = vmatpush2.bf16.msra.mxu0 %v1545
        %1922 = vmatprep.subr.bf16.mxu0 0
        %1923 = vmatpush2.bf16.msra.mxu0 %v1544
        %1924 = vmatprep.subr.bf16.mxu0 0
        %1925 = vmatpush2.bf16.msra.mxu0 %v1543
        %1926 = vmatprep.subr.bf16.mxu0 0
        %1927 = vmatpush2.bf16.msra.mxu0 %v1542
        %1928 = vmatprep.subr.bf16.mxu0 0
        %1929 = vmatpush2.bf16.msra.mxu0 %v1541
        %1930 = vmatprep.subr.bf16.mxu0 0
        %1931 = vmatpush2.bf16.msra.mxu0 %v1540
        %1932 = vmatprep.subr.bf16.mxu0 0
        %1933 = vmatpush2.bf16.msra.mxu0 %v1539
        %1934 = vmatprep.mubr.bf16.mxu0 %v1084
        %1935 = vmatmul.mubr.bf16.gmra.mxu0 %v980
        %v1936 = vpop.f32.mrf.mxu0
        %v1937 = vadd.f32 %v1840, %v1936
        %v1938 = vpop.f32.mrf.mxu0
        %v1939 = vpop.f32.mrf.mxu0
        %v1940 = vadd.f32 %v1843, %v1939
        %v1941 = vpop.f32.mrf.mxu0
        %1942 = vmatprep.mubr.bf16.mxu0 %v1085
        %1943 = vmatmul.mubr.bf16.gmra.mxu0 %v981
        %v1944 = vpop.f32.mrf.mxu0
        %v1945 = vadd.f32 %v1848, %v1944
        %v1946 = vpop.f32.mrf.mxu0
        %v1947 = vpop.f32.mrf.mxu0
        %v1948 = vadd.f32 %v1851, %v1947
        %v1949 = vpop.f32.mrf.mxu0
        %1950 = vmatprep.mubr.bf16.mxu0 %v1086
        %1951 = vmatmul.mubr.bf16.gmra.mxu0 %v982
        %v1952 = vpop.f32.mrf.mxu0
        %v1953 = vadd.f32 %v1856, %v1952
        %v1954 = vpop.f32.mrf.mxu0
        %v1955 = vpop.f32.mrf.mxu0
        %v1956 = vadd.f32 %v1859, %v1955
        %v1957 = vpop.f32.mrf.mxu0
        %1958 = vmatprep.mubr.bf16.mxu0 %v1087
        %1959 = vmatmul.mubr.bf16.gmra.mxu0 %v983
        %v1960 = vpop.f32.mrf.mxu0
        %v1961 = vadd.f32 %v1864, %v1960
        %v1962 = vpop.f32.mrf.mxu0
        %v1963 = vpop.f32.mrf.mxu0
        %v1964 = vadd.f32 %v1867, %v1963
        %v1965 = vpop.f32.mrf.mxu0
        %1966 = vmatprep.mubr.bf16.mxu0 %v1088
        %1967 = vmatmul.mubr.bf16.gmra.mxu0 %v984
        %v1968 = vpop.f32.mrf.mxu0
        %v1969 = vadd.f32 %v1872, %v1968
        %v1970 = vpop.f32.mrf.mxu0
        %v1971 = vpop.f32.mrf.mxu0
        %v1972 = vadd.f32 %v1875, %v1971
        %v1973 = vpop.f32.mrf.mxu0
        %1974 = vmatprep.mubr.bf16.mxu0 %v1089
        %1975 = vmatmul.mubr.bf16.gmra.mxu0 %v985
        %v1976 = vpop.f32.mrf.mxu0
        %v1977 = vadd.f32 %v1880, %v1976
        %v1978 = vpop.f32.mrf.mxu0
        %v1979 = vpop.f32.mrf.mxu0
        %v1980 = vadd.f32 %v1883, %v1979
        %v1981 = vpop.f32.mrf.mxu0
        %1982 = vmatprep.mubr.bf16.mxu0 %v1090
        %1983 = vmatmul.mubr.bf16.gmra.mxu0 %v986
        %v1984 = vpop.f32.mrf.mxu0
        %v1985 = vadd.f32 %v1888, %v1984
        %v1986 = vpop.f32.mrf.mxu0
        %v1987 = vpop.f32.mrf.mxu0
        %v1988 = vadd.f32 %v1891, %v1987
        %v1989 = vpop.f32.mrf.mxu0
        %1990 = vmatprep.mubr.bf16.mxu0 %v1091
        %1991 = vmatmul.mubr.bf16.gmra.mxu0 %v987
        %v1992 = vpop.f32.mrf.mxu0
        %v1993 = vadd.f32 %v1896, %v1992
        %v1994 = vpop.f32.mrf.mxu0
        %v1995 = vpop.f32.mrf.mxu0
        %v1996 = vadd.f32 %v1899, %v1995
        %v1997 = vpop.f32.mrf.mxu0
        %1998 = vdwg.mxu0
        %v1999 = vtanh.pop %v1937
        %v2000 = vtanh.pop %v1940
        %v2001 = vtanh.pop %v1945
        %v2002 = vtanh.pop %v1948
        %v2003 = vtanh.pop %v1953
        %v2004 = vtanh.pop %v1956
        %v2005 = vtanh.pop %v1961
        %v2006 = vtanh.pop %v1964
        %v2007 = vtanh.pop %v1969
        %v2008 = vtanh.pop %v1972
        %v2009 = vtanh.pop %v1977
        %v2010 = vtanh.pop %v1980
        %v2011 = vtanh.pop %v1985
        %v2012 = vtanh.pop %v1988
        %v2013 = vtanh.pop %v1993
        %v2014 = vtanh.pop %v1996
        %v2015 = vpack.c.bf16 %v2000, %v1999
        %v2016 = vpack.c.bf16 %v2002, %v2001
        %v2017 = vpack.c.bf16 %v2004, %v2003
        %v2018 = vpack.c.bf16 %v2006, %v2005
        %v2019 = vpack.c.bf16 %v2008, %v2007
        %v2020 = vpack.c.bf16 %v2010, %v2009
        %v2021 = vpack.c.bf16 %v2012, %v2011
        %v2022 = vpack.c.bf16 %v2014, %v2013
        %v2023 = vld [vmem:[%s3] sm:$0xf]
        %v2024 = vld [vmem:[%s3 + $0x4] sm:$0xf]
        %v2025 = vld [vmem:[%s3 + $0x8] sm:$0xf]
        %v2026 = vld [vmem:[%s3 + $0xc] sm:$0xf]
        %v2027 = vld [vmem:[%s3 + $0x10] sm:$0xf]
        %v2028 = vld [vmem:[%s3 + $0x14] sm:$0xf]
        %v2029 = vld [vmem:[%s3 + $0x18] sm:$0xf]
        %v2030 = vld [vmem:[%s3 + $0x1c] sm:$0xf]
        %v2031 = vld [vmem:[%s3 + $0x20] sm:$0xf]
        %v2032 = vld [vmem:[%s3 + $0x24] sm:$0xf]
        %v2033 = vld [vmem:[%s3 + $0x28] sm:$0xf]
        %v2034 = vld [vmem:[%s3 + $0x2c] sm:$0xf]
        %v2035 = vld [vmem:[%s3 + $0x30] sm:$0xf]
        %v2036 = vld [vmem:[%s3 + $0x34] sm:$0xf]
        %v2037 = vld [vmem:[%s3 + $0x38] sm:$0xf]
        %v2038 = vld [vmem:[%s3 + $0x3c] sm:$0xf]
        %v2039 = vld [vmem:[%s4] sm:$0x1]
        %v2041 = vlaneseq
        %v2042 = vshrl.u32 %v2041, 7
        %v2043 = vsub.s32 0, %v2042
        %v2044 = vrot.slane %v2039, %v2043
        %v2062 = vunpack.c.l.b16 %v2023
        %v2063 = vunpack.c.l.b16 %v2024
        %v2064 = vunpack.c.l.b16 %v2025
        %v2065 = vunpack.c.l.b16 %v2026
        %v2066 = vunpack.c.l.b16 %v2027
        %v2067 = vunpack.c.l.b16 %v2028
        %v2068 = vunpack.c.l.b16 %v2029
        %v2069 = vunpack.c.l.b16 %v2030
        %v2070 = vunpack.c.l.b16 %v2031
        %v2071 = vunpack.c.l.b16 %v2032
        %v2072 = vunpack.c.l.b16 %v2033
        %v2073 = vunpack.c.l.b16 %v2034
        %v2074 = vunpack.c.l.b16 %v2035
        %v2075 = vunpack.c.l.b16 %v2036
        %v2076 = vunpack.c.l.b16 %v2037
        %v2077 = vunpack.c.l.b16 %v2038
        %v2078 = vpack.c.b16 %v2063, %v2062
        %v2079 = vpack.c.b16 %v2065, %v2064
        %v2080 = vpack.c.b16 %v2067, %v2066
        %v2081 = vpack.c.b16 %v2069, %v2068
        %v2082 = vpack.c.b16 %v2071, %v2070
        %v2083 = vpack.c.b16 %v2073, %v2072
        %v2084 = vpack.c.b16 %v2075, %v2074
        %v2085 = vpack.c.b16 %v2077, %v2076
        %2094 = vmatprep.subr.bf16.mxu0 0
        %2095 = vmatpush1.bf16.msra.mxu0 %v2085
        %2096 = vmatprep.subr.bf16.mxu0 0
        %2097 = vmatpush1.bf16.msra.mxu0 %v2084
        %2098 = vmatprep.subr.bf16.mxu0 0
        %2099 = vmatpush1.bf16.msra.mxu0 %v2083
        %2100 = vmatprep.subr.bf16.mxu0 0
        %2101 = vmatpush1.bf16.msra.mxu0 %v2082
        %2102 = vmatprep.subr.bf16.mxu0 0
        %2103 = vmatpush1.bf16.msra.mxu0 %v2081
        %2104 = vmatprep.subr.bf16.mxu0 0
        %2105 = vmatpush1.bf16.msra.mxu0 %v2080
        %2106 = vmatprep.subr.bf16.mxu0 0
        %2107 = vmatpush1.bf16.msra.mxu0 %v2079
        %2108 = vmatprep.subr.bf16.mxu0 0
        %2109 = vmatpush1.bf16.msra.mxu0 %v2078
        %2110 = vmatprep.subr.bf16.mxu0 0
        %2111 = vmatpush2.bf16.msra.mxu0 0
        %2112 = vmatprep.subr.bf16.mxu0 0
        %2113 = vmatpush2.bf16.msra.mxu0 0
        %2114 = vmatprep.subr.bf16.mxu0 0
        %2115 = vmatpush2.bf16.msra.mxu0 0
        %2116 = vmatprep.subr.bf16.mxu0 0
        %2117 = vmatpush2.bf16.msra.mxu0 0
        %2118 = vmatprep.subr.bf16.mxu0 0
        %2119 = vmatpush2.bf16.msra.mxu0 0
        %2120 = vmatprep.subr.bf16.mxu0 0
        %2121 = vmatpush2.bf16.msra.mxu0 0
        %2122 = vmatprep.subr.bf16.mxu0 0
        %2123 = vmatpush2.bf16.msra.mxu0 0
        %2124 = vmatprep.subr.bf16.mxu0 0
        %2125 = vmatpush2.bf16.msra.mxu0 0
        %2126 = vmatprep.mubr.bf16.mxu0 0
        %2127 = vmatmul.mubr.bf16.gmra.mxu0 %v2015
        %v2128 = vpop.f32.mrf.mxu0
        %v2129 = vadd.f32 %v2044, %v2128
        %v2130 = vpop.f32.mrf.mxu0
        %v2131 = vpop.f32.mrf.mxu0
        %v2132 = vadd.f32 %v2044, %v2131
        %v2133 = vpop.f32.mrf.mxu0
        %2134 = vmatprep.mubr.bf16.mxu0 0
        %2135 = vmatmul.mubr.bf16.gmra.mxu0 %v2016
        %v2136 = vpop.f32.mrf.mxu0
        %v2137 = vadd.f32 %v2044, %v2136
        %v2138 = vpop.f32.mrf.mxu0
        %v2139 = vpop.f32.mrf.mxu0
        %v2140 = vadd.f32 %v2044, %v2139
        %v2141 = vpop.f32.mrf.mxu0
        %2142 = vmatprep.mubr.bf16.mxu0 0
        %2143 = vmatmul.mubr.bf16.gmra.mxu0 %v2017
        %v2144 = vpop.f32.mrf.mxu0
        %v2145 = vadd.f32 %v2044, %v2144
        %v2146 = vpop.f32.mrf.mxu0
        %v2147 = vpop.f32.mrf.mxu0
        %v2148 = vadd.f32 %v2044, %v2147
        %v2149 = vpop.f32.mrf.mxu0
        %2150 = vmatprep.mubr.bf16.mxu0 0
        %2151 = vmatmul.mubr.bf16.gmra.mxu0 %v2018
        %v2152 = vpop.f32.mrf.mxu0
        %v2153 = vadd.f32 %v2044, %v2152
        %v2154 = vpop.f32.mrf.mxu0
        %v2155 = vpop.f32.mrf.mxu0
        %v2156 = vadd.f32 %v2044, %v2155
        %v2157 = vpop.f32.mrf.mxu0
        %2158 = vmatprep.mubr.bf16.mxu0 0
        %2159 = vmatmul.mubr.bf16.gmra.mxu0 %v2019
        %v2160 = vpop.f32.mrf.mxu0
        %v2161 = vadd.f32 %v2044, %v2160
        %v2162 = vpop.f32.mrf.mxu0
        %v2163 = vpop.f32.mrf.mxu0
        %v2164 = vadd.f32 %v2044, %v2163
        %v2165 = vpop.f32.mrf.mxu0
        %2166 = vmatprep.mubr.bf16.mxu0 0
        %2167 = vmatmul.mubr.bf16.gmra.mxu0 %v2020
        %v2168 = vpop.f32.mrf.mxu0
        %v2169 = vadd.f32 %v2044, %v2168
        %v2170 = vpop.f32.mrf.mxu0
        %v2171 = vpop.f32.mrf.mxu0
        %v2172 = vadd.f32 %v2044, %v2171
        %v2173 = vpop.f32.mrf.mxu0
        %2174 = vmatprep.mubr.bf16.mxu0 0
        %2175 = vmatmul.mubr.bf16.gmra.mxu0 %v2021
        %v2176 = vpop.f32.mrf.mxu0
        %v2177 = vadd.f32 %v2044, %v2176
        %v2178 = vpop.f32.mrf.mxu0
        %v2179 = vpop.f32.mrf.mxu0
        %v2180 = vadd.f32 %v2044, %v2179
        %v2181 = vpop.f32.mrf.mxu0
        %2182 = vmatprep.mubr.bf16.mxu0 0
        %2183 = vmatmul.mubr.bf16.gmra.mxu0 %v2022
        %v2184 = vpop.f32.mrf.mxu0
        %v2185 = vadd.f32 %v2044, %v2184
        %v2186 = vpop.f32.mrf.mxu0
        %v2187 = vpop.f32.mrf.mxu0
        %v2188 = vadd.f32 %v2044, %v2187
        %v2189 = vpop.f32.mrf.mxu0
        %2190 = vdwg.mxu0
        %2191 = vmax.xlane.f32.xlu0 %v2129
        %v2192 = vpop.xlane.xlu0 %2191
        %2193 = vmax.xlane.f32.xlu0 %v2132
        %v2194 = vpop.xlane.xlu0 %2193
        %2195 = vmax.xlane.f32.xlu0 %v2137
        %v2196 = vpop.xlane.xlu0 %2195
        %2197 = vmax.xlane.f32.xlu0 %v2140
        %v2198 = vpop.xlane.xlu0 %2197
        %2199 = vmax.xlane.f32.xlu0 %v2145
        %v2200 = vpop.xlane.xlu0 %2199
        %2201 = vmax.xlane.f32.xlu0 %v2148
        %v2202 = vpop.xlane.xlu0 %2201
        %2203 = vmax.xlane.f32.xlu0 %v2153
        %v2204 = vpop.xlane.xlu0 %2203
        %2205 = vmax.xlane.f32.xlu0 %v2156
        %v2206 = vpop.xlane.xlu0 %2205
        %2207 = vmax.xlane.f32.xlu0 %v2161
        %v2208 = vpop.xlane.xlu0 %2207
        %2209 = vmax.xlane.f32.xlu0 %v2164
        %v2210 = vpop.xlane.xlu0 %2209
        %2211 = vmax.xlane.f32.xlu0 %v2169
        %v2212 = vpop.xlane.xlu0 %2211
        %2213 = vmax.xlane.f32.xlu0 %v2172
        %v2214 = vpop.xlane.xlu0 %2213
        %2215 = vmax.xlane.f32.xlu0 %v2177
        %v2216 = vpop.xlane.xlu0 %2215
        %2217 = vmax.xlane.f32.xlu0 %v2180
        %v2218 = vpop.xlane.xlu0 %2217
        %2219 = vmax.xlane.f32.xlu0 %v2185
        %v2220 = vpop.xlane.xlu0 %2219
        %2221 = vmax.xlane.f32.xlu0 %v2188
        %v2222 = vpop.xlane.xlu0 %2221
        %v2223 = vsub.f32 %v2129, %v2192
        %v2224 = vsub.f32 %v2132, %v2194
        %v2225 = vsub.f32 %v2137, %v2196
        %v2226 = vsub.f32 %v2140, %v2198
        %v2227 = vsub.f32 %v2145, %v2200
        %v2228 = vsub.f32 %v2148, %v2202
        %v2229 = vsub.f32 %v2153, %v2204
        %v2230 = vsub.f32 %v2156, %v2206
        %v2231 = vsub.f32 %v2161, %v2208
        %v2232 = vsub.f32 %v2164, %v2210
        %v2233 = vsub.f32 %v2169, %v2212
        %v2234 = vsub.f32 %v2172, %v2214
        %v2235 = vsub.f32 %v2177, %v2216
        %v2236 = vsub.f32 %v2180, %v2218
        %v2237 = vsub.f32 %v2185, %v2220
        %v2238 = vsub.f32 %v2188, %v2222
        %v2239 = vmul.f32 %v2223, 1.442695
        %v2240 = vpow.pop %v2239
        %v2241 = vmul.f32 %v2224, 1.442695
        %v2242 = vpow.pop %v2241
        %v2243 = vmul.f32 %v2225, 1.442695
        %v2244 = vpow.pop %v2243
        %v2245 = vmul.f32 %v2226, 1.442695
        %v2246 = vpow.pop %v2245
        %v2247 = vmul.f32 %v2227, 1.442695
        %v2248 = vpow.pop %v2247
        %v2249 = vmul.f32 %v2228, 1.442695
        %v2250 = vpow.pop %v2249
        %v2251 = vmul.f32 %v2229, 1.442695
        %v2252 = vpow.pop %v2251
        %v2253 = vmul.f32 %v2230, 1.442695
        %v2254 = vpow.pop %v2253
        %v2255 = vmul.f32 %v2231, 1.442695
        %v2256 = vpow.pop %v2255
        %v2257 = vmul.f32 %v2232, 1.442695
        %v2258 = vpow.pop %v2257
        %v2259 = vmul.f32 %v2233, 1.442695
        %v2260 = vpow.pop %v2259
        %v2261 = vmul.f32 %v2234, 1.442695
        %v2262 = vpow.pop %v2261
        %v2263 = vmul.f32 %v2235, 1.442695
        %v2264 = vpow.pop %v2263
        %v2265 = vmul.f32 %v2236, 1.442695
        %v2266 = vpow.pop %v2265
        %v2267 = vmul.f32 %v2237, 1.442695
        %v2268 = vpow.pop %v2267
        %v2269 = vmul.f32 %v2238, 1.442695
        %v2270 = vpow.pop %v2269
        %2271 = vadd.xlane.f32.xlu0 %v2240
        %v2272 = vpop.xlane.xlu0 %2271
        %2273 = vadd.xlane.f32.xlu0 %v2242
        %v2274 = vpop.xlane.xlu0 %2273
        %2275 = vadd.xlane.f32.xlu0 %v2244
        %v2276 = vpop.xlane.xlu0 %2275
        %2277 = vadd.xlane.f32.xlu0 %v2246
        %v2278 = vpop.xlane.xlu0 %2277
        %2279 = vadd.xlane.f32.xlu0 %v2248
        %v2280 = vpop.xlane.xlu0 %2279
        %2281 = vadd.xlane.f32.xlu0 %v2250
        %v2282 = vpop.xlane.xlu0 %2281
        %2283 = vadd.xlane.f32.xlu0 %v2252
        %v2284 = vpop.xlane.xlu0 %2283
        %2285 = vadd.xlane.f32.xlu0 %v2254
        %v2286 = vpop.xlane.xlu0 %2285
        %2287 = vadd.xlane.f32.xlu0 %v2256
        %v2288 = vpop.xlane.xlu0 %2287
        %2289 = vadd.xlane.f32.xlu0 %v2258
        %v2290 = vpop.xlane.xlu0 %2289
        %2291 = vadd.xlane.f32.xlu0 %v2260
        %v2292 = vpop.xlane.xlu0 %2291
        %2293 = vadd.xlane.f32.xlu0 %v2262
        %v2294 = vpop.xlane.xlu0 %2293
        %2295 = vadd.xlane.f32.xlu0 %v2264
        %v2296 = vpop.xlane.xlu0 %2295
        %2297 = vadd.xlane.f32.xlu0 %v2266
        %v2298 = vpop.xlane.xlu0 %2297
        %2299 = vadd.xlane.f32.xlu0 %v2268
        %v2300 = vpop.xlane.xlu0 %2299
        %2301 = vadd.xlane.f32.xlu0 %v2270
        %v2302 = vpop.xlane.xlu0 %2301
        %v2303 = vlog2.pop %v2272
        %v2304 = vmul.f32 %v2303, 0.6931472
        %v2305 = vlog2.pop %v2274
        %v2306 = vmul.f32 %v2305, 0.6931472
        %v2307 = vlog2.pop %v2276
        %v2308 = vmul.f32 %v2307, 0.6931472
        %v2309 = vlog2.pop %v2278
        %v2310 = vmul.f32 %v2309, 0.6931472
        %v2311 = vlog2.pop %v2280
        %v2312 = vmul.f32 %v2311, 0.6931472
        %v2313 = vlog2.pop %v2282
        %v2314 = vmul.f32 %v2313, 0.6931472
        %v2315 = vlog2.pop %v2284
        %v2316 = vmul.f32 %v2315, 0.6931472
        %v2317 = vlog2.pop %v2286
        %v2318 = vmul.f32 %v2317, 0.6931472
        %v2319 = vlog2.pop %v2288
        %v2320 = vmul.f32 %v2319, 0.6931472
        %v2321 = vlog2.pop %v2290
        %v2322 = vmul.f32 %v2321, 0.6931472
        %v2323 = vlog2.pop %v2292
        %v2324 = vmul.f32 %v2323, 0.6931472
        %v2325 = vlog2.pop %v2294
        %v2326 = vmul.f32 %v2325, 0.6931472
        %v2327 = vlog2.pop %v2296
        %v2328 = vmul.f32 %v2327, 0.6931472
        %v2329 = vlog2.pop %v2298
        %v2330 = vmul.f32 %v2329, 0.6931472
        %v2331 = vlog2.pop %v2300
        %v2332 = vmul.f32 %v2331, 0.6931472
        %v2333 = vlog2.pop %v2302
        %v2334 = vmul.f32 %v2333, 0.6931472
        %v2335 = vsub.f32 %v2223, %v2304
        %v2336 = vsub.f32 %v2224, %v2306
        %v2337 = vsub.f32 %v2225, %v2308
        %v2338 = vsub.f32 %v2226, %v2310
        %v2339 = vsub.f32 %v2227, %v2312
        %v2340 = vsub.f32 %v2228, %v2314
        %v2341 = vsub.f32 %v2229, %v2316
        %v2342 = vsub.f32 %v2230, %v2318
        %v2343 = vsub.f32 %v2231, %v2320
        %v2344 = vsub.f32 %v2232, %v2322
        %v2345 = vsub.f32 %v2233, %v2324
        %v2346 = vsub.f32 %v2234, %v2326
        %v2347 = vsub.f32 %v2235, %v2328
        %v2348 = vsub.f32 %v2236, %v2330
        %v2349 = vsub.f32 %v2237, %v2332
        %v2350 = vsub.f32 %v2238, %v2334
        %2351 = vst [vmem:[%s233] sm:$0xff] %v2335
        %2352 = vst [vmem:[%s233 + $0x8] sm:$0xff] %v2336
        %2353 = vst [vmem:[%s233 + $0x10] sm:$0xff] %v2337
        %2354 = vst [vmem:[%s233 + $0x18] sm:$0xff] %v2338
        %2355 = vst [vmem:[%s233 + $0x20] sm:$0xff] %v2339
        %2356 = vst [vmem:[%s233 + $0x28] sm:$0xff] %v2340
        %2357 = vst [vmem:[%s233 + $0x30] sm:$0xff] %v2341
        %2358 = vst [vmem:[%s233 + $0x38] sm:$0xff] %v2342
        %2359 = vst [vmem:[%s233 + $0x40] sm:$0xff] %v2343
        %2360 = vst [vmem:[%s233 + $0x48] sm:$0xff] %v2344
        %2361 = vst [vmem:[%s233 + $0x50] sm:$0xff] %v2345
        %2362 = vst [vmem:[%s233 + $0x58] sm:$0xff] %v2346
        %2363 = vst [vmem:[%s233 + $0x60] sm:$0xff] %v2347
        %2364 = vst [vmem:[%s233 + $0x68] sm:$0xff] %v2348
        %2365 = vst [vmem:[%s233 + $0x70] sm:$0xff] %v2349
        %2366 = vst [vmem:[%s233 + $0x78] sm:$0xff] %v2350
        %s2367 = sand.u32 %s138, 1
        %s2368 = scalar_lea.sflag [#allocation4], %s2367
        %s2369 = sand.u32 %s138, 1
        %s2370 = smul.addr %s2369, 128
        %s2371 = scalar_lea.vmem [#allocation5], %s2370
        // Predicated region
        $region45: #{tpu_custom_call.1} parent=39 // pred_check
          %p2372 = pneg %p148
        $region46: #{tpu_custom_call.1} parent=39 // pred_check_branch
          %2374 = sbr.rel (%p2372) target = $region48
        $region47: #{tpu_custom_call.1} parent=39 // pred_region
          %s2375 = smul.u32 16, %s20
          %s2377 = ssub.s32 2048, 2048
          %2378 = vsyncadd %s2368, %s2377
          %s2379 = smul.addr %s2375, 128
          %s2380 = scalar_lea.hbm %s5, %s2379
          %s2381 = sshll.u32 %s2371, 4
          %s2382 = int_to_ptr.vmem [resolvable:$true] %s2381
          %2387 = dma.vmem_to_hbm [thread:$0]  %s2382, 2048, %s2380, %s2368, 128, 128, 8
        $region48: #{tpu_custom_call.1} parent=39 // pred_fallthru
          _
      $region40: #{tpu_custom_call.1} parent=5 // pred_fallthru
        _
      %p2388 = scmp.le.s32.totalorder 2, %s15
      // Predicated region
      $region49: #{tpu_custom_call.1} parent=5 // pred_check
        %p2389 = pneg %p2388
      $region50: #{tpu_custom_call.1} parent=5 // pred_check_branch
        %2391 = sbr.rel (%p2389) target = $region52
      $region51: #{tpu_custom_call.1} parent=5 // pred_region
        %s2392 = ssub.s32 %s15, 2
        // Predicated region
        $region53: #{tpu_custom_call.1} parent=51 // pred_check
          %p2393 = pneg %p154
        $region54: #{tpu_custom_call.1} parent=51 // pred_check_branch
          %2395 = sbr.rel (%p2393) target = $region56
        $region55: #{tpu_custom_call.1} parent=51 // pred_region
          %s2396 = sand.u32 %s139, 1
          %s2397 = scalar_lea.sflag [#allocation4], %s2396
          %s2398 = sand.u32 %s139, 1
          %s2399 = smul.addr %s2398, 128
          %s2400 = scalar_lea.vmem [#allocation5], %s2399
          %2401 = dma.done %s2397, 2048
        $region56: #{tpu_custom_call.1} parent=51 // pred_fallthru
          _
      $region52: #{tpu_custom_call.1} parent=5 // pred_fallthru
        _
    $region6: #{tpu_custom_call.1} parent=1 // loop_footer
      %s19 = sadd.s32 1, %s15
    $region7: #{tpu_custom_call.1} parent=1 // loop_footer_branch
      %14 = sbr.rel target = $region3
    $region8: #{tpu_custom_call.1} parent=1 // loop_exit
      _
    %2402 = vsyncpa [#allocation3], 1
    %s2403 = scalar_lea.sflag [#allocation3], 1
    %2404 = vsyncpa %s2403, 1
    %2405 = vsyncpa [#allocation4], 1
    %s2406 = scalar_lea.sflag [#allocation4], 1
    %2407 = vsyncpa %s2406, 1

</llo_original>
